<compile_context>
chip_gen: v6e
topology: v6e:2x2x1
jax: 0.10.0
libtpu: 0.0.40
codegen_flags: <defaults>
</compile_context>

<pallas_src>
import functools
import math

import numpy as np
import jax
import jax.numpy as jnp
from jax import lax
from jax.experimental import pallas as pl
from jax.experimental.pallas import tpu as pltpu

EPS = 1e-5        # InstanceNorm2d default eps
SLOPE = 0.2       # LeakyReLU negative slope
INV_SQRT2 = 1.0 / math.sqrt(2.0)


def _leaky(x):
    return jnp.where(x >= 0, x, SLOPE * x)


def _inorm(x, gamma, beta):
    # x: (C, HW); per-channel stats over the spatial (lane) axis, biased var.
    mu = jnp.mean(x, axis=1, keepdims=True)
    xc = x - mu
    var = jnp.mean(xc * xc, axis=1, keepdims=True)
    return xc * lax.rsqrt(var + EPS) * gamma + beta


def resblock_kernel(x_ref, wsc_ref, w1_ref, b1_ref, w2_ref, b2_ref,
                    g1_ref, be1_ref, g2_ref, be2_ref,
                    m1_ref, m2_ref, pt_ref, o_ref,
                    *, cin, cout, w_full, w_half):
    f32 = jnp.float32
    x = x_ref[0].astype(f32)                                      # (Cin, HW)

    def conv3x3(h, taps_ref, bias_ref, mask_ref, n_out, w_img):
        # h: (Cin, N).  One fused matmul mixes channels for all 9 taps at
        # once (MXU, N lanes dense); the 3x3 spatial structure is then applied
        # with static pltpu.roll shifts (XLU) + 0/1 border masks (VPU).
        n = h.shape[1]
        y = jnp.dot(taps_ref[...], h, preferred_element_type=f32)  # (9*n_out, N)
        masks = mask_ref[...]                                      # (9, 1, N)
        acc = y[4 * n_out:5 * n_out, :]                            # center tap
        for k in range(9):
            if k == 4:
                continue
            dy, dx = k // 3 - 1, k % 3 - 1
            off = dy * w_img + dx                                  # flat offset
            zk = pltpu.roll(y[k * n_out:(k + 1) * n_out, :], (-off) % n, 1)
            acc = acc + zk * masks[k]
        return acc + bias_ref[...]

    # ------------- shortcut: pool, then 1x1 conv (they commute) -------------
    x_p = jnp.dot(x, pt_ref[...], preferred_element_type=f32)      # (Cin, HW/4)
    sc = jnp.dot(wsc_ref[...], x_p, preferred_element_type=f32)    # (Cout, HW/4)

    # ------------- residual path ---------------------------------------------
    h = _leaky(_inorm(x, g1_ref[...], be1_ref[...]))                # norm1+actv
    h = conv3x3(h, w1_ref, b1_ref, m1_ref, cin, w_full)             # conv1
    h = jnp.dot(h, pt_ref[...], preferred_element_type=f32)        # avg_pool2d
    h = _leaky(_inorm(h, g2_ref[...], be2_ref[...]))                # norm2+actv
    h = conv3x3(h, w2_ref, b2_ref, m2_ref, cout, w_half)            # conv2

    o_ref[0] = ((sc + h) * INV_SQRT2).astype(o_ref.dtype)


def _border_masks(H, W):
    """masks[k, 0, p] = 1 iff the 3x3 tap-k neighbor of flat position p is
    inside the image (zero-padded 'same' conv)."""
    M = np.zeros((9, 1, H * W), np.float32)
    for k in range(9):
        dy, dx = k // 3 - 1, k % 3 - 1
        for y in range(H):
            for x in range(W):
                if 0 <= y + dy < H and 0 <= x + dx < W:
                    M[k, 0, y * W + x] = 1.0
    return jnp.asarray(M)


def _pool_mat_T(H, W):
    """h(C,HW) @ Pt = avg_pool2d(h, 2) flattened; Pt is (HW, HW/4)."""
    Pt = np.zeros((H * W, (H // 2) * (W // 2)), np.float32)
    for i in range(H // 2):
        for j in range(W // 2):
            q = i * (W // 2) + j
            for r in range(2):
                for c in range(2):
                    Pt[(2 * i + r) * W + (2 * j + c), q] = 0.25
    return jnp.asarray(Pt)


def residual_block_pallas(x_nchw, params):
    B, Cin, H, W = x_nchw.shape
    Cout = params["wsc"].shape[0]
    HW, HW2 = H * W, (H // 2) * (W // 2)

    x_flat = x_nchw.reshape(B, Cin, HW)          # NCHW -> (B, C, HW), no copy
    m1 = _border_masks(H, W)
    m2 = _border_masks(H // 2, W // 2)
    pt = _pool_mat_T(H, W)

    kernel = functools.partial(resblock_kernel, cin=Cin, cout=Cout,
                               w_full=W, w_half=W // 2)

    grid_spec = pltpu.PrefetchScalarGridSpec(
        num_scalar_prefetch=0,
        grid=(B,),
        in_specs=[
            pl.BlockSpec((1, Cin, HW), lambda b: (b, 0, 0)),      # x
            pl.BlockSpec((Cout, Cin), lambda b: (0, 0)),          # 1x1 conv weight
            pl.BlockSpec((9 * Cin, Cin), lambda b: (0, 0)),       # conv1 taps (stacked)
            pl.BlockSpec((Cin, 1), lambda b: (0, 0)),             # conv1 bias
            pl.BlockSpec((9 * Cout, Cin), lambda b: (0, 0)),      # conv2 taps (stacked)
            pl.BlockSpec((Cout, 1), lambda b: (0, 0)),            # conv2 bias
            pl.BlockSpec((Cin, 1), lambda b: (0, 0)),             # norm1 gamma
            pl.BlockSpec((Cin, 1), lambda b: (0, 0)),             # norm1 beta
            pl.BlockSpec((Cin, 1), lambda b: (0, 0)),             # norm2 gamma
            pl.BlockSpec((Cin, 1), lambda b: (0, 0)),             # norm2 beta
            pl.BlockSpec((9, 1, HW), lambda b: (0, 0, 0)),        # border masks (full res)
            pl.BlockSpec((9, 1, HW2), lambda b: (0, 0, 0)),       # border masks (pooled)
            pl.BlockSpec((HW, HW2), lambda b: (0, 0)),            # pooling matrix
        ],
        out_specs=pl.BlockSpec((1, Cout, HW2), lambda b: (b, 0, 0)),
    )
    out_flat = pl.pallas_call(
        kernel,
        out_shape=jax.ShapeDtypeStruct((B, Cout, HW2), jnp.float32),
        grid_spec=grid_spec,
        compiler_params=pltpu.CompilerParams(dimension_semantics=("parallel",)),
    )(x_flat,
      params["wsc"],
      params["w1s"], params["b1"],
      params["w2s"], params["b2"],
      params["g1"], params["be1"],
      params["g2"], params["be2"],
      m1, m2, pt)

    return out_flat.reshape(B, Cout, H // 2, W // 2)              # already NCHW


# ----------------------------- pure-JAX reference ----------------------------
def ref_forward(x, wc1, bc1, wc2, bc2, w1x1, g1, be1, g2, be2):
    def conv(x, w, b=None):
        y = lax.conv_general_dilated(x, w, (1, 1), "SAME",
                                     dimension_numbers=("NCHW", "OIHW", "NCHW"))
        if b is not None:
            y = y + b[None, :, None, None]
        return y

    def inorm(x, g, b):
        mu = x.mean(axis=(2, 3), keepdims=True)
        var = ((x - mu) ** 2).mean(axis=(2, 3), keepdims=True)
        return (x - mu) / jnp.sqrt(var + EPS) * g[None, :, None, None] + b[None, :, None, None]

    def pool(x):
        B_, C_, H_, W_ = x.shape
        return x.reshape(B_, C_, H_ // 2, 2, W_ // 2, 2).mean(axis=(3, 5))

    def lrelu(x):
        return jnp.where(x >= 0, x, SLOPE * x)

    sc = pool(conv(x, w1x1))                       # shortcut (1x1 conv, no bias)
    h = lrelu(inorm(x, g1, be1))
    h = pool(conv(h, wc1, bc1))
    h = lrelu(inorm(h, g2, be2))
    h = conv(h, wc2, bc2)
    return (sc + h) / math.sqrt(2.0)


if __name__ == "__main__":
    B, dim_in, dim_out, H, W = 2, 4, 8, 16, 16

    key = jax.random.PRNGKey(0)
    ks = jax.random.split(key, 10)
    x = jax.random.normal(ks[0], (B, dim_in, H, W), jnp.float32)

    # deterministic synthetic parameters (PyTorch OIHW layouts)
    wc1 = 0.1 * jax.random.normal(ks[1], (dim_in, dim_in, 3, 3), jnp.float32)
    bc1 = 0.1 * jax.random.normal(ks[2], (dim_in,), jnp.float32)
    wc2 = 0.1 * jax.random.normal(ks[3], (dim_out, dim_in, 3, 3), jnp.float32)
    bc2 = 0.1 * jax.random.normal(ks[4], (dim_out,), jnp.float32)
    w1x1 = 0.1 * jax.random.normal(ks[5], (dim_out, dim_in, 1, 1), jnp.float32)
    g1 = 1.0 + 0.1 * jax.random.normal(ks[6], (dim_in,), jnp.float32)
    be1 = 0.1 * jax.random.normal(ks[7], (dim_in,), jnp.float32)
    g2 = 1.0 + 0.1 * jax.random.normal(ks[8], (dim_in,), jnp.float32)
    be2 = 0.1 * jax.random.normal(ks[9], (dim_in,), jnp.float32)

    # kernel-layout parameters:
    #   taps stacked as (9*Cout, Cin) so one matmul mixes channels for all taps
    params = dict(
        wsc=w1x1[:, :, 0, 0],                                               # (Cout, Cin)
        w1s=jnp.transpose(wc1, (2, 3, 0, 1)).reshape(9 * dim_in, dim_in),   # (9*Cin, Cin)
        b1=bc1.reshape(dim_in, 1),
        w2s=jnp.transpose(wc2, (2, 3, 0, 1)).reshape(9 * dim_out, dim_in),  # (9*Cout, Cin)
        b2=bc2.reshape(dim_out, 1),
        g1=g1.reshape(dim_in, 1), be1=be1.reshape(dim_in, 1),
        g2=g2.reshape(dim_in, 1), be2=be2.reshape(dim_in, 1),
    )

    out = residual_block_pallas(x, params)
    out = jax.block_until_ready(out)

    ref = ref_forward(x, wc1, bc1, wc2, bc2, w1x1, g1, be1, g2, be2)
    ref = jax.block_until_ready(ref)

    np.testing.assert_allclose(np.asarray(out), np.asarray(ref), rtol=2e-4, atol=2e-4)
    print("KERNEL_OK")
</pallas_src>

<mosaic_0001>
module attributes {stable_mosaic.version = 11 : i64} {
  func.func @resblock_kernel(%arg0: i32, %arg1: memref<1x4x256xf32, #tpu.memory_space<vmem>>, %arg2: memref<8x4xf32, #tpu.memory_space<vmem>>, %arg3: memref<36x4xf32, #tpu.memory_space<vmem>>, %arg4: memref<4x1xf32, #tpu.memory_space<vmem>>, %arg5: memref<72x4xf32, #tpu.memory_space<vmem>>, %arg6: memref<8x1xf32, #tpu.memory_space<vmem>>, %arg7: memref<4x1xf32, #tpu.memory_space<vmem>>, %arg8: memref<4x1xf32, #tpu.memory_space<vmem>>, %arg9: memref<4x1xf32, #tpu.memory_space<vmem>>, %arg10: memref<4x1xf32, #tpu.memory_space<vmem>>, %arg11: memref<9x1x256xf32, #tpu.memory_space<vmem>>, %arg12: memref<9x1x64xf32, #tpu.memory_space<vmem>>, %arg13: memref<256x64xf32, #tpu.memory_space<vmem>>, %arg14: memref<1x8x64xf32, #tpu.memory_space<vmem>>) attributes {dimension_semantics = [#tpu.dimension_semantics<parallel>], iteration_bounds = array<i64: 2>, scalar_prefetch = 0 : i64, scratch_operands = 0 : i64, tpu.core_type = #tpu.core_type<tc>, window_params = [{transform_indices = @transform_0, window_bounds = array<i64: 1, 4, 256>}, {pipeline_mode = #tpu.pipeline_mode<synchronous>, transform_indices = @transform_1, window_bounds = array<i64: 8, 4>}, {pipeline_mode = #tpu.pipeline_mode<synchronous>, transform_indices = @transform_2, window_bounds = array<i64: 36, 4>}, {pipeline_mode = #tpu.pipeline_mode<synchronous>, transform_indices = @transform_3, window_bounds = array<i64: 4, 1>}, {pipeline_mode = #tpu.pipeline_mode<synchronous>, transform_indices = @transform_4, window_bounds = array<i64: 72, 4>}, {pipeline_mode = #tpu.pipeline_mode<synchronous>, transform_indices = @transform_5, window_bounds = array<i64: 8, 1>}, {pipeline_mode = #tpu.pipeline_mode<synchronous>, transform_indices = @transform_6, window_bounds = array<i64: 4, 1>}, {pipeline_mode = #tpu.pipeline_mode<synchronous>, transform_indices = @transform_7, window_bounds = array<i64: 4, 1>}, {pipeline_mode = #tpu.pipeline_mode<synchronous>, transform_indices = @transform_8, window_bounds = array<i64: 4, 1>}, {pipeline_mode = #tpu.pipeline_mode<synchronous>, transform_indices = @transform_9, window_bounds = array<i64: 4, 1>}, {pipeline_mode = #tpu.pipeline_mode<synchronous>, transform_indices = @transform_10, window_bounds = array<i64: 9, 1, 256>}, {pipeline_mode = #tpu.pipeline_mode<synchronous>, transform_indices = @transform_11, window_bounds = array<i64: 9, 1, 64>}, {pipeline_mode = #tpu.pipeline_mode<synchronous>, transform_indices = @transform_12, window_bounds = array<i64: 256, 64>}, {transform_indices = @transform_13, window_bounds = array<i64: 1, 8, 64>}]} {
    %c0 = arith.constant 0 : index
    %c0_0 = arith.constant 0 : index
    %c0_1 = arith.constant 0 : index
    %0 = vector.load %arg1[%c0, %c0_0, %c0_1] : memref<1x4x256xf32, #tpu.memory_space<vmem>>, vector<1x4x256xf32>
    %1 = vector.shape_cast %0 : vector<1x4x256xf32> to vector<4x256xf32>
    %c0_2 = arith.constant 0 : index
    %c0_3 = arith.constant 0 : index
    %2 = vector.load %arg13[%c0_2, %c0_3] : memref<256x64xf32, #tpu.memory_space<vmem>>, vector<256x64xf32>
    %cst = arith.constant dense<0.000000e+00> : vector<4x64xf32>
    %3 = tpu.matmul %1, %2, %cst {dimension_numbers = #tpu.dot_dimension_numbers<[1], [0], [0], [1], [0, 0, 1, 1], [], []>} : vector<4x256xf32>, vector<256x64xf32>, vector<4x64xf32> -> vector<4x64xf32>
    %c0_4 = arith.constant 0 : index
    %c0_5 = arith.constant 0 : index
    %4 = vector.load %arg2[%c0_4, %c0_5] : memref<8x4xf32, #tpu.memory_space<vmem>>, vector<8x4xf32>
    %cst_6 = arith.constant dense<0.000000e+00> : vector<8x64xf32>
    %5 = tpu.matmul %4, %3, %cst_6 {dimension_numbers = #tpu.dot_dimension_numbers<[1], [0], [0], [1], [0, 0, 1, 1], [], []>} : vector<8x4xf32>, vector<4x64xf32>, vector<8x64xf32> -> vector<8x64xf32>
    %c0_7 = arith.constant 0 : index
    %c0_8 = arith.constant 0 : index
    %6 = vector.load %arg7[%c0_7, %c0_8] : memref<4x1xf32, #tpu.memory_space<vmem>>, vector<4x1xf32>
    %c0_9 = arith.constant 0 : index
    %c0_10 = arith.constant 0 : index
    %7 = vector.load %arg8[%c0_9, %c0_10] : memref<4x1xf32, #tpu.memory_space<vmem>>, vector<4x1xf32>
    %cst_11 = arith.constant dense<0.000000e+00> : vector<4xf32>
    %8 = vector.multi_reduction <add>, %1, %cst_11 [1] : vector<4x256xf32> to vector<4xf32>
    %9 = vector.shape_cast %8 : vector<4xf32> to vector<4x1xf32>
    %cst_12 = arith.constant 2.560000e+02 : f32
    %10 = vector.broadcast %cst_12 : f32 to vector<4x1xf32>
    %11 = arith.divf %9, %10 : vector<4x1xf32>
    %12 = vector.broadcast %11 : vector<4x1xf32> to vector<4x256xf32>
    %13 = arith.subf %1, %12 : vector<4x256xf32>
    %14 = arith.mulf %13, %13 : vector<4x256xf32>
    %cst_13 = arith.constant dense<0.000000e+00> : vector<4xf32>
    %15 = vector.multi_reduction <add>, %14, %cst_13 [1] : vector<4x256xf32> to vector<4xf32>
    %16 = vector.shape_cast %15 : vector<4xf32> to vector<4x1xf32>
    %cst_14 = arith.constant 2.560000e+02 : f32
    %17 = vector.broadcast %cst_14 : f32 to vector<4x1xf32>
    %18 = arith.divf %16, %17 : vector<4x1xf32>
    %cst_15 = arith.constant 9.99999974E-6 : f32
    %19 = vector.broadcast %cst_15 : f32 to vector<4x1xf32>
    %20 = arith.addf %18, %19 : vector<4x1xf32>
    %21 = math.rsqrt %20 : vector<4x1xf32>
    %22 = vector.broadcast %21 : vector<4x1xf32> to vector<4x256xf32>
    %23 = arith.mulf %13, %22 : vector<4x256xf32>
    %24 = vector.broadcast %6 : vector<4x1xf32> to vector<4x256xf32>
    %25 = arith.mulf %23, %24 : vector<4x256xf32>
    %26 = vector.broadcast %7 : vector<4x1xf32> to vector<4x256xf32>
    %27 = arith.addf %25, %26 : vector<4x256xf32>
    %cst_16 = arith.constant 0.000000e+00 : f32
    %28 = vector.broadcast %cst_16 : f32 to vector<4x256xf32>
    %29 = arith.cmpf oge, %27, %28 : vector<4x256xf32>
    %cst_17 = arith.constant 2.000000e-01 : f32
    %30 = vector.broadcast %cst_17 : f32 to vector<4x256xf32>
    %31 = arith.mulf %30, %27 : vector<4x256xf32>
    %32 = arith.select %29, %27, %31 : vector<4x256xi1>, vector<4x256xf32>
    %c0_18 = arith.constant 0 : index
    %c0_19 = arith.constant 0 : index
    %33 = vector.load %arg3[%c0_18, %c0_19] : memref<36x4xf32, #tpu.memory_space<vmem>>, vector<36x4xf32>
    %cst_20 = arith.constant dense<0.000000e+00> : vector<36x256xf32>
    %34 = tpu.matmul %33, %32, %cst_20 {dimension_numbers = #tpu.dot_dimension_numbers<[1], [0], [0], [1], [0, 0, 1, 1], [], []>} : vector<36x4xf32>, vector<4x256xf32>, vector<36x256xf32> -> vector<36x256xf32>
    %c0_21 = arith.constant 0 : index
    %c0_22 = arith.constant 0 : index
    %c0_23 = arith.constant 0 : index
    %35 = vector.load %arg11[%c0_21, %c0_22, %c0_23] : memref<9x1x256xf32, #tpu.memory_space<vmem>>, vector<9x1x256xf32>
    %36 = vector.extract_strided_slice %34 {offsets = [16, 0], sizes = [4, 256], strides = [1, 1]} : vector<36x256xf32> to vector<4x256xf32>
    %37 = vector.extract_strided_slice %34 {offsets = [0, 0], sizes = [4, 256], strides = [1, 1]} : vector<36x256xf32> to vector<4x256xf32>
    %c17_i32 = arith.constant 17 : i32
    %38 = tpu.dynamic_rotate %37 by %c17_i32 dim 1 : vector<4x256xf32>, i32 -> vector<4x256xf32>
    %39 = vector.extract_strided_slice %35 {offsets = [0, 0, 0], sizes = [1, 1, 256], strides = [1, 1, 1]} : vector<9x1x256xf32> to vector<1x1x256xf32>
    %40 = vector.shape_cast %39 : vector<1x1x256xf32> to vector<1x256xf32>
    %41 = vector.broadcast %40 : vector<1x256xf32> to vector<4x256xf32>
    %42 = arith.mulf %38, %41 : vector<4x256xf32>
    %43 = arith.addf %36, %42 : vector<4x256xf32>
    %44 = vector.extract_strided_slice %34 {offsets = [4, 0], sizes = [4, 256], strides = [1, 1]} : vector<36x256xf32> to vector<4x256xf32>
    %c16_i32 = arith.constant 16 : i32
    %45 = tpu.dynamic_rotate %44 by %c16_i32 dim 1 : vector<4x256xf32>, i32 -> vector<4x256xf32>
    %46 = vector.extract_strided_slice %35 {offsets = [1, 0, 0], sizes = [1, 1, 256], strides = [1, 1, 1]} : vector<9x1x256xf32> to vector<1x1x256xf32>
    %47 = vector.shape_cast %46 : vector<1x1x256xf32> to vector<1x256xf32>
    %48 = vector.broadcast %47 : vector<1x256xf32> to vector<4x256xf32>
    %49 = arith.mulf %45, %48 : vector<4x256xf32>
    %50 = arith.addf %43, %49 : vector<4x256xf32>
    %51 = vector.extract_strided_slice %34 {offsets = [8, 0], sizes = [4, 256], strides = [1, 1]} : vector<36x256xf32> to vector<4x256xf32>
    %c15_i32 = arith.constant 15 : i32
    %52 = tpu.dynamic_rotate %51 by %c15_i32 dim 1 : vector<4x256xf32>, i32 -> vector<4x256xf32>
    %53 = vector.extract_strided_slice %35 {offsets = [2, 0, 0], sizes = [1, 1, 256], strides = [1, 1, 1]} : vector<9x1x256xf32> to vector<1x1x256xf32>
    %54 = vector.shape_cast %53 : vector<1x1x256xf32> to vector<1x256xf32>
    %55 = vector.broadcast %54 : vector<1x256xf32> to vector<4x256xf32>
    %56 = arith.mulf %52, %55 : vector<4x256xf32>
    %57 = arith.addf %50, %56 : vector<4x256xf32>
    %58 = vector.extract_strided_slice %34 {offsets = [12, 0], sizes = [4, 256], strides = [1, 1]} : vector<36x256xf32> to vector<4x256xf32>
    %c1_i32 = arith.constant 1 : i32
    %59 = tpu.dynamic_rotate %58 by %c1_i32 dim 1 : vector<4x256xf32>, i32 -> vector<4x256xf32>
    %60 = vector.extract_strided_slice %35 {offsets = [3, 0, 0], sizes = [1, 1, 256], strides = [1, 1, 1]} : vector<9x1x256xf32> to vector<1x1x256xf32>
    %61 = vector.shape_cast %60 : vector<1x1x256xf32> to vector<1x256xf32>
    %62 = vector.broadcast %61 : vector<1x256xf32> to vector<4x256xf32>
    %63 = arith.mulf %59, %62 : vector<4x256xf32>
    %64 = arith.addf %57, %63 : vector<4x256xf32>
    %65 = vector.extract_strided_slice %34 {offsets = [20, 0], sizes = [4, 256], strides = [1, 1]} : vector<36x256xf32> to vector<4x256xf32>
    %c255_i32 = arith.constant 255 : i32
    %66 = tpu.dynamic_rotate %65 by %c255_i32 dim 1 : vector<4x256xf32>, i32 -> vector<4x256xf32>
    %67 = vector.extract_strided_slice %35 {offsets = [5, 0, 0], sizes = [1, 1, 256], strides = [1, 1, 1]} : vector<9x1x256xf32> to vector<1x1x256xf32>
    %68 = vector.shape_cast %67 : vector<1x1x256xf32> to vector<1x256xf32>
    %69 = vector.broadcast %68 : vector<1x256xf32> to vector<4x256xf32>
    %70 = arith.mulf %66, %69 : vector<4x256xf32>
    %71 = arith.addf %64, %70 : vector<4x256xf32>
    %72 = vector.extract_strided_slice %34 {offsets = [24, 0], sizes = [4, 256], strides = [1, 1]} : vector<36x256xf32> to vector<4x256xf32>
    %c241_i32 = arith.constant 241 : i32
    %73 = tpu.dynamic_rotate %72 by %c241_i32 dim 1 : vector<4x256xf32>, i32 -> vector<4x256xf32>
    %74 = vector.extract_strided_slice %35 {offsets = [6, 0, 0], sizes = [1, 1, 256], strides = [1, 1, 1]} : vector<9x1x256xf32> to vector<1x1x256xf32>
    %75 = vector.shape_cast %74 : vector<1x1x256xf32> to vector<1x256xf32>
    %76 = vector.broadcast %75 : vector<1x256xf32> to vector<4x256xf32>
    %77 = arith.mulf %73, %76 : vector<4x256xf32>
    %78 = arith.addf %71, %77 : vector<4x256xf32>
    %79 = vector.extract_strided_slice %34 {offsets = [28, 0], sizes = [4, 256], strides = [1, 1]} : vector<36x256xf32> to vector<4x256xf32>
    %c240_i32 = arith.constant 240 : i32
    %80 = tpu.dynamic_rotate %79 by %c240_i32 dim 1 : vector<4x256xf32>, i32 -> vector<4x256xf32>
    %81 = vector.extract_strided_slice %35 {offsets = [7, 0, 0], sizes = [1, 1, 256], strides = [1, 1, 1]} : vector<9x1x256xf32> to vector<1x1x256xf32>
    %82 = vector.shape_cast %81 : vector<1x1x256xf32> to vector<1x256xf32>
    %83 = vector.broadcast %82 : vector<1x256xf32> to vector<4x256xf32>
    %84 = arith.mulf %80, %83 : vector<4x256xf32>
    %85 = arith.addf %78, %84 : vector<4x256xf32>
    %86 = vector.extract_strided_slice %34 {offsets = [32, 0], sizes = [4, 256], strides = [1, 1]} : vector<36x256xf32> to vector<4x256xf32>
    %c239_i32 = arith.constant 239 : i32
    %87 = tpu.dynamic_rotate %86 by %c239_i32 dim 1 : vector<4x256xf32>, i32 -> vector<4x256xf32>
    %88 = vector.extract_strided_slice %35 {offsets = [8, 0, 0], sizes = [1, 1, 256], strides = [1, 1, 1]} : vector<9x1x256xf32> to vector<1x1x256xf32>
    %89 = vector.shape_cast %88 : vector<1x1x256xf32> to vector<1x256xf32>
    %90 = vector.broadcast %89 : vector<1x256xf32> to vector<4x256xf32>
    %91 = arith.mulf %87, %90 : vector<4x256xf32>
    %92 = arith.addf %85, %91 : vector<4x256xf32>
    %c0_24 = arith.constant 0 : index
    %c0_25 = arith.constant 0 : index
    %93 = vector.load %arg4[%c0_24, %c0_25] : memref<4x1xf32, #tpu.memory_space<vmem>>, vector<4x1xf32>
    %94 = vector.broadcast %93 : vector<4x1xf32> to vector<4x256xf32>
    %95 = arith.addf %92, %94 : vector<4x256xf32>
    %c0_26 = arith.constant 0 : index
    %c0_27 = arith.constant 0 : index
    %96 = vector.load %arg13[%c0_26, %c0_27] : memref<256x64xf32, #tpu.memory_space<vmem>>, vector<256x64xf32>
    %cst_28 = arith.constant dense<0.000000e+00> : vector<4x64xf32>
    %97 = tpu.matmul %95, %96, %cst_28 {dimension_numbers = #tpu.dot_dimension_numbers<[1], [0], [0], [1], [0, 0, 1, 1], [], []>} : vector<4x256xf32>, vector<256x64xf32>, vector<4x64xf32> -> vector<4x64xf32>
    %c0_29 = arith.constant 0 : index
    %c0_30 = arith.constant 0 : index
    %98 = vector.load %arg9[%c0_29, %c0_30] : memref<4x1xf32, #tpu.memory_space<vmem>>, vector<4x1xf32>
    %c0_31 = arith.constant 0 : index
    %c0_32 = arith.constant 0 : index
    %99 = vector.load %arg10[%c0_31, %c0_32] : memref<4x1xf32, #tpu.memory_space<vmem>>, vector<4x1xf32>
    %cst_33 = arith.constant dense<0.000000e+00> : vector<4xf32>
    %100 = vector.multi_reduction <add>, %97, %cst_33 [1] : vector<4x64xf32> to vector<4xf32>
    %101 = vector.shape_cast %100 : vector<4xf32> to vector<4x1xf32>
    %cst_34 = arith.constant 6.400000e+01 : f32
    %102 = vector.broadcast %cst_34 : f32 to vector<4x1xf32>
    %103 = arith.divf %101, %102 : vector<4x1xf32>
    %104 = vector.broadcast %103 : vector<4x1xf32> to vector<4x64xf32>
    %105 = arith.subf %97, %104 : vector<4x64xf32>
    %106 = arith.mulf %105, %105 : vector<4x64xf32>
    %cst_35 = arith.constant dense<0.000000e+00> : vector<4xf32>
    %107 = vector.multi_reduction <add>, %106, %cst_35 [1] : vector<4x64xf32> to vector<4xf32>
    %108 = vector.shape_cast %107 : vector<4xf32> to vector<4x1xf32>
    %cst_36 = arith.constant 6.400000e+01 : f32
    %109 = vector.broadcast %cst_36 : f32 to vector<4x1xf32>
    %110 = arith.divf %108, %109 : vector<4x1xf32>
    %cst_37 = arith.constant 9.99999974E-6 : f32
    %111 = vector.broadcast %cst_37 : f32 to vector<4x1xf32>
    %112 = arith.addf %110, %111 : vector<4x1xf32>
    %113 = math.rsqrt %112 : vector<4x1xf32>
    %114 = vector.broadcast %113 : vector<4x1xf32> to vector<4x64xf32>
    %115 = arith.mulf %105, %114 : vector<4x64xf32>
    %116 = vector.broadcast %98 : vector<4x1xf32> to vector<4x64xf32>
    %117 = arith.mulf %115, %116 : vector<4x64xf32>
    %118 = vector.broadcast %99 : vector<4x1xf32> to vector<4x64xf32>
    %119 = arith.addf %117, %118 : vector<4x64xf32>
    %cst_38 = arith.constant 0.000000e+00 : f32
    %120 = vector.broadcast %cst_38 : f32 to vector<4x64xf32>
    %121 = arith.cmpf oge, %119, %120 : vector<4x64xf32>
    %cst_39 = arith.constant 2.000000e-01 : f32
    %122 = vector.broadcast %cst_39 : f32 to vector<4x64xf32>
    %123 = arith.mulf %122, %119 : vector<4x64xf32>
    %124 = arith.select %121, %119, %123 : vector<4x64xi1>, vector<4x64xf32>
    %c0_40 = arith.constant 0 : index
    %c0_41 = arith.constant 0 : index
    %125 = vector.load %arg5[%c0_40, %c0_41] : memref<72x4xf32, #tpu.memory_space<vmem>>, vector<72x4xf32>
    %cst_42 = arith.constant dense<0.000000e+00> : vector<72x64xf32>
    %126 = tpu.matmul %125, %124, %cst_42 {dimension_numbers = #tpu.dot_dimension_numbers<[1], [0], [0], [1], [0, 0, 1, 1], [], []>} : vector<72x4xf32>, vector<4x64xf32>, vector<72x64xf32> -> vector<72x64xf32>
    %c0_43 = arith.constant 0 : index
    %c0_44 = arith.constant 0 : index
    %c0_45 = arith.constant 0 : index
    %127 = vector.load %arg12[%c0_43, %c0_44, %c0_45] : memref<9x1x64xf32, #tpu.memory_space<vmem>>, vector<9x1x64xf32>
    %128 = vector.extract_strided_slice %126 {offsets = [32, 0], sizes = [8, 64], strides = [1, 1]} : vector<72x64xf32> to vector<8x64xf32>
    %129 = vector.extract_strided_slice %126 {offsets = [0, 0], sizes = [8, 64], strides = [1, 1]} : vector<72x64xf32> to vector<8x64xf32>
    %c9_i32 = arith.constant 9 : i32
    %130 = tpu.dynamic_rotate %129 by %c9_i32 dim 1 : vector<8x64xf32>, i32 -> vector<8x64xf32>
    %131 = vector.extract_strided_slice %127 {offsets = [0, 0, 0], sizes = [1, 1, 64], strides = [1, 1, 1]} : vector<9x1x64xf32> to vector<1x1x64xf32>
    %132 = vector.shape_cast %131 : vector<1x1x64xf32> to vector<1x64xf32>
    %133 = vector.broadcast %132 : vector<1x64xf32> to vector<8x64xf32>
    %134 = arith.mulf %130, %133 : vector<8x64xf32>
    %135 = arith.addf %128, %134 : vector<8x64xf32>
    %136 = vector.extract_strided_slice %126 {offsets = [8, 0], sizes = [8, 64], strides = [1, 1]} : vector<72x64xf32> to vector<8x64xf32>
    %c8_i32 = arith.constant 8 : i32
    %137 = tpu.dynamic_rotate %136 by %c8_i32 dim 1 : vector<8x64xf32>, i32 -> vector<8x64xf32>
    %138 = vector.extract_strided_slice %127 {offsets = [1, 0, 0], sizes = [1, 1, 64], strides = [1, 1, 1]} : vector<9x1x64xf32> to vector<1x1x64xf32>
    %139 = vector.shape_cast %138 : vector<1x1x64xf32> to vector<1x64xf32>
    %140 = vector.broadcast %139 : vector<1x64xf32> to vector<8x64xf32>
    %141 = arith.mulf %137, %140 : vector<8x64xf32>
    %142 = arith.addf %135, %141 : vector<8x64xf32>
    %143 = vector.extract_strided_slice %126 {offsets = [16, 0], sizes = [8, 64], strides = [1, 1]} : vector<72x64xf32> to vector<8x64xf32>
    %c7_i32 = arith.constant 7 : i32
    %144 = tpu.dynamic_rotate %143 by %c7_i32 dim 1 : vector<8x64xf32>, i32 -> vector<8x64xf32>
    %145 = vector.extract_strided_slice %127 {offsets = [2, 0, 0], sizes = [1, 1, 64], strides = [1, 1, 1]} : vector<9x1x64xf32> to vector<1x1x64xf32>
    %146 = vector.shape_cast %145 : vector<1x1x64xf32> to vector<1x64xf32>
    %147 = vector.broadcast %146 : vector<1x64xf32> to vector<8x64xf32>
    %148 = arith.mulf %144, %147 : vector<8x64xf32>
    %149 = arith.addf %142, %148 : vector<8x64xf32>
    %150 = vector.extract_strided_slice %126 {offsets = [24, 0], sizes = [8, 64], strides = [1, 1]} : vector<72x64xf32> to vector<8x64xf32>
    %c1_i32_46 = arith.constant 1 : i32
    %151 = tpu.dynamic_rotate %150 by %c1_i32_46 dim 1 : vector<8x64xf32>, i32 -> vector<8x64xf32>
    %152 = vector.extract_strided_slice %127 {offsets = [3, 0, 0], sizes = [1, 1, 64], strides = [1, 1, 1]} : vector<9x1x64xf32> to vector<1x1x64xf32>
    %153 = vector.shape_cast %152 : vector<1x1x64xf32> to vector<1x64xf32>
    %154 = vector.broadcast %153 : vector<1x64xf32> to vector<8x64xf32>
    %155 = arith.mulf %151, %154 : vector<8x64xf32>
    %156 = arith.addf %149, %155 : vector<8x64xf32>
    %157 = vector.extract_strided_slice %126 {offsets = [40, 0], sizes = [8, 64], strides = [1, 1]} : vector<72x64xf32> to vector<8x64xf32>
    %c63_i32 = arith.constant 63 : i32
    %158 = tpu.dynamic_rotate %157 by %c63_i32 dim 1 : vector<8x64xf32>, i32 -> vector<8x64xf32>
    %159 = vector.extract_strided_slice %127 {offsets = [5, 0, 0], sizes = [1, 1, 64], strides = [1, 1, 1]} : vector<9x1x64xf32> to vector<1x1x64xf32>
    %160 = vector.shape_cast %159 : vector<1x1x64xf32> to vector<1x64xf32>
    %161 = vector.broadcast %160 : vector<1x64xf32> to vector<8x64xf32>
    %162 = arith.mulf %158, %161 : vector<8x64xf32>
    %163 = arith.addf %156, %162 : vector<8x64xf32>
    %164 = vector.extract_strided_slice %126 {offsets = [48, 0], sizes = [8, 64], strides = [1, 1]} : vector<72x64xf32> to vector<8x64xf32>
    %c57_i32 = arith.constant 57 : i32
    %165 = tpu.dynamic_rotate %164 by %c57_i32 dim 1 : vector<8x64xf32>, i32 -> vector<8x64xf32>
    %166 = vector.extract_strided_slice %127 {offsets = [6, 0, 0], sizes = [1, 1, 64], strides = [1, 1, 1]} : vector<9x1x64xf32> to vector<1x1x64xf32>
    %167 = vector.shape_cast %166 : vector<1x1x64xf32> to vector<1x64xf32>
    %168 = vector.broadcast %167 : vector<1x64xf32> to vector<8x64xf32>
    %169 = arith.mulf %165, %168 : vector<8x64xf32>
    %170 = arith.addf %163, %169 : vector<8x64xf32>
    %171 = vector.extract_strided_slice %126 {offsets = [56, 0], sizes = [8, 64], strides = [1, 1]} : vector<72x64xf32> to vector<8x64xf32>
    %c56_i32 = arith.constant 56 : i32
    %172 = tpu.dynamic_rotate %171 by %c56_i32 dim 1 : vector<8x64xf32>, i32 -> vector<8x64xf32>
    %173 = vector.extract_strided_slice %127 {offsets = [7, 0, 0], sizes = [1, 1, 64], strides = [1, 1, 1]} : vector<9x1x64xf32> to vector<1x1x64xf32>
    %174 = vector.shape_cast %173 : vector<1x1x64xf32> to vector<1x64xf32>
    %175 = vector.broadcast %174 : vector<1x64xf32> to vector<8x64xf32>
    %176 = arith.mulf %172, %175 : vector<8x64xf32>
    %177 = arith.addf %170, %176 : vector<8x64xf32>
    %178 = vector.extract_strided_slice %126 {offsets = [64, 0], sizes = [8, 64], strides = [1, 1]} : vector<72x64xf32> to vector<8x64xf32>
    %c55_i32 = arith.constant 55 : i32
    %179 = tpu.dynamic_rotate %178 by %c55_i32 dim 1 : vector<8x64xf32>, i32 -> vector<8x64xf32>
    %180 = vector.extract_strided_slice %127 {offsets = [8, 0, 0], sizes = [1, 1, 64], strides = [1, 1, 1]} : vector<9x1x64xf32> to vector<1x1x64xf32>
    %181 = vector.shape_cast %180 : vector<1x1x64xf32> to vector<1x64xf32>
    %182 = vector.broadcast %181 : vector<1x64xf32> to vector<8x64xf32>
    %183 = arith.mulf %179, %182 : vector<8x64xf32>
    %184 = arith.addf %177, %183 : vector<8x64xf32>
    %c0_47 = arith.constant 0 : index
    %c0_48 = arith.constant 0 : index
    %185 = vector.load %arg6[%c0_47, %c0_48] : memref<8x1xf32, #tpu.memory_space<vmem>>, vector<8x1xf32>
    %186 = vector.broadcast %185 : vector<8x1xf32> to vector<8x64xf32>
    %187 = arith.addf %184, %186 : vector<8x64xf32>
    %188 = arith.addf %5, %187 : vector<8x64xf32>
    %cst_49 = arith.constant 0.707106769 : f32
    %189 = vector.broadcast %cst_49 : f32 to vector<8x64xf32>
    %190 = arith.mulf %188, %189 : vector<8x64xf32>
    %c0_50 = arith.constant 0 : index
    %c0_51 = arith.constant 0 : index
    %c0_52 = arith.constant 0 : index
    %191 = vector.load %arg14[%c0_50, %c0_51, %c0_52] : memref<1x8x64xf32, #tpu.memory_space<vmem>>, vector<1x8x64xf32>
    %192 = vector.shape_cast %191 : vector<1x8x64xf32> to vector<8x64xf32>
    %193 = vector.shape_cast %190 : vector<8x64xf32> to vector<1x8x64xf32>
    tpu.vector_store %arg14[%c0_50, %c0_51, %c0_52], %193 {strides = array<i32>} : memref<1x8x64xf32, #tpu.memory_space<vmem>>, vector<1x8x64xf32>,
    return
  }
  func.func @transform_0(%arg0: i32) -> (i32, i32, i32) {
    %c0_i32 = arith.constant 0 : i32
    %c0_i32_0 = arith.constant 0 : i32
    %c0_i32_1 = arith.constant 0 : i32
    return %arg0, %c0_i32, %c0_i32_0 : i32, i32, i32
  }
  func.func @transform_1(%arg0: i32) -> (i32, i32) {
    %c0_i32 = arith.constant 0 : i32
    %c0_i32_0 = arith.constant 0 : i32
    %c0_i32_1 = arith.constant 0 : i32
    return %c0_i32, %c0_i32_0 : i32, i32
  }
  func.func @transform_2(%arg0: i32) -> (i32, i32) {
    %c0_i32 = arith.constant 0 : i32
    %c0_i32_0 = arith.constant 0 : i32
    %c0_i32_1 = arith.constant 0 : i32
    return %c0_i32, %c0_i32_0 : i32, i32
  }
  func.func @transform_3(%arg0: i32) -> (i32, i32) {
    %c0_i32 = arith.constant 0 : i32
    %c0_i32_0 = arith.constant 0 : i32
    %c0_i32_1 = arith.constant 0 : i32
    return %c0_i32, %c0_i32_0 : i32, i32
  }
  func.func @transform_4(%arg0: i32) -> (i32, i32) {
    %c0_i32 = arith.constant 0 : i32
    %c0_i32_0 = arith.constant 0 : i32
    %c0_i32_1 = arith.constant 0 : i32
    return %c0_i32, %c0_i32_0 : i32, i32
  }
  func.func @transform_5(%arg0: i32) -> (i32, i32) {
    %c0_i32 = arith.constant 0 : i32
    %c0_i32_0 = arith.constant 0 : i32
    %c0_i32_1 = arith.constant 0 : i32
    return %c0_i32, %c0_i32_0 : i32, i32
  }
  func.func @transform_6(%arg0: i32) -> (i32, i32) {
    %c0_i32 = arith.constant 0 : i32
    %c0_i32_0 = arith.constant 0 : i32
    %c0_i32_1 = arith.constant 0 : i32
    return %c0_i32, %c0_i32_0 : i32, i32
  }
  func.func @transform_7(%arg0: i32) -> (i32, i32) {
    %c0_i32 = arith.constant 0 : i32
    %c0_i32_0 = arith.constant 0 : i32
    %c0_i32_1 = arith.constant 0 : i32
    return %c0_i32, %c0_i32_0 : i32, i32
  }
  func.func @transform_8(%arg0: i32) -> (i32, i32) {
    %c0_i32 = arith.constant 0 : i32
    %c0_i32_0 = arith.constant 0 : i32
    %c0_i32_1 = arith.constant 0 : i32
    return %c0_i32, %c0_i32_0 : i32, i32
  }
  func.func @transform_9(%arg0: i32) -> (i32, i32) {
    %c0_i32 = arith.constant 0 : i32
    %c0_i32_0 = arith.constant 0 : i32
    %c0_i32_1 = arith.constant 0 : i32
    return %c0_i32, %c0_i32_0 : i32, i32
  }
  func.func @transform_10(%arg0: i32) -> (i32, i32, i32) {
    %c0_i32 = arith.constant 0 : i32
    %c0_i32_0 = arith.constant 0 : i32
    %c0_i32_1 = arith.constant 0 : i32
    %c0_i32_2 = arith.constant 0 : i32
    return %c0_i32, %c0_i32_0, %c0_i32_1 : i32, i32, i32
  }
  func.func @transform_11(%arg0: i32) -> (i32, i32, i32) {
    %c0_i32 = arith.constant 0 : i32
    %c0_i32_0 = arith.constant 0 : i32
    %c0_i32_1 = arith.constant 0 : i32
    %c0_i32_2 = arith.constant 0 : i32
    return %c0_i32, %c0_i32_0, %c0_i32_1 : i32, i32, i32
  }
  func.func @transform_12(%arg0: i32) -> (i32, i32) {
    %c0_i32 = arith.constant 0 : i32
    %c0_i32_0 = arith.constant 0 : i32
    %c0_i32_1 = arith.constant 0 : i32
    return %c0_i32, %c0_i32_0 : i32, i32
  }
  func.func @transform_13(%arg0: i32) -> (i32, i32, i32) {
    %c0_i32 = arith.constant 0 : i32
    %c0_i32_0 = arith.constant 0 : i32
    %c0_i32_1 = arith.constant 0 : i32
    return %arg0, %c0_i32, %c0_i32_0 : i32, i32, i32
  }
}

</mosaic_0001>

<llo_original>
// kernel: tpu_custom_call.1
$region0: #{tpu_custom_call.1}
  #allocation0 [shape = 'u32[]', space=smem, size = 0x4, offset = 0x4, fixed_abs, tag = 'smem constant byte address 0x4 - core index']
  #allocation1 [shape = 'u32[144,128]{1,0:T(1,128)}', space=vmem, size = 0x12000, scoped, tag = 'internal scratch']
  %s0 = inlined_call_operand.vmem [shape: f32[2,4,256], index: 0, kind: input, shape index: {}]
  %s1 = inlined_call_operand.vmem [shape: f32[8,4], index: 1, kind: input, shape index: {}]
  %s2 = inlined_call_operand.vmem [shape: f32[36,4], index: 2, kind: input, shape index: {}]
  %s3 = inlined_call_operand.vmem [shape: f32[4,1], index: 3, kind: input, shape index: {}]
  %s4 = inlined_call_operand.vmem [shape: f32[72,4], index: 4, kind: input, shape index: {}]
  %s5 = inlined_call_operand.vmem [shape: f32[8,1], index: 5, kind: input, shape index: {}]
  %s6 = inlined_call_operand.vmem [shape: f32[4,1], index: 6, kind: input, shape index: {}]
  %s7 = inlined_call_operand.vmem [shape: f32[4,1], index: 7, kind: input, shape index: {}]
  %s8 = inlined_call_operand.vmem [shape: f32[4,1], index: 8, kind: input, shape index: {}]
  %s9 = inlined_call_operand.vmem [shape: f32[4,1], index: 9, kind: input, shape index: {}]
  %s10 = inlined_call_operand.vmem [shape: f32[9,1,256], index: 10, kind: input, shape index: {}]
  %s11 = inlined_call_operand.vmem [shape: f32[9,1,64], index: 11, kind: input, shape index: {}]
  %s12 = inlined_call_operand.vmem [shape: f32[256,64], index: 12, kind: input, shape index: {}]
  %s13 = inlined_call_operand.hbm [shape: f32[2,8,64], index: 13, kind: output, shape index: {}]
  %s14 = sld [smem:[#allocation0]]
  $region85: #{tpu_custom_call.1} parent=0
    _
  %s16 = ssub.s32 1, %s14
  %s17 = scalar_select 0, %s16, %s14
  $region1: #{tpu_custom_call.1} parent=0
    #allocation2 [shape = 'u8[8192]{0}', space=vmem, size = 0x2000, scoped, tag = 'output window, operand 0']
    #allocation3 [shape = 's32[2]{0}', space=sflag, size = 0x8, scoped, tag = 'scoped memory for tpu_custom_call.1']
    %18 = vsyncpa [#allocation3], 0
    %s19 = scalar_lea.sflag [#allocation3], 1
    %20 = vsyncpa %s19, 0
    loop: start=0, step=1, limit=4
    $region2: #{tpu_custom_call.1} parent=1 // loop_pre_header
      _
    $region3: #{tpu_custom_call.1} parent=1 // loop_header
      %s22 = sphi 0, %s26
      %p23 = scmp.ge.s32.totalorder %s22, 4
      %s32 = sphi 0, %s34
      %s35 = sphi 0, %s32
      %s36 = sphi 0, %s35
      %s52 = sphi 0, %s36
      %s56 = sphi 0, %s56
      %s58 = sphi 0, %s56
      %s59 = sphi 0, %s58
      %s73 = sphi 0, %s59
      %s77 = sphi 0, %s77
      %s79 = sphi 0, %s77
      %s80 = sphi 0, %s79
      %s94 = sphi 0, %s80
      %s98 = sphi 0, %s98
      %s100 = sphi 0, %s98
      %s101 = sphi 0, %s100
      %s115 = sphi 0, %s101
      %s119 = sphi 0, %s119
      %s121 = sphi 0, %s119
      %s122 = sphi 0, %s121
      %s136 = sphi 0, %s122
      %s140 = sphi 0, %s140
      %s142 = sphi 0, %s140
      %s143 = sphi 0, %s142
      %s157 = sphi 0, %s143
      %s161 = sphi 0, %s161
      %s163 = sphi 0, %s161
      %s164 = sphi 0, %s163
      %s178 = sphi 0, %s164
      %s182 = sphi 0, %s182
      %s184 = sphi 0, %s182
      %s185 = sphi 0, %s184
      %s199 = sphi 0, %s185
      %s203 = sphi 0, %s203
      %s205 = sphi 0, %s203
      %s206 = sphi 0, %s205
      %s220 = sphi 0, %s206
      %s224 = sphi 0, %s224
      %s226 = sphi 0, %s224
      %s227 = sphi 0, %s226
      %s241 = sphi 0, %s227
      %s245 = sphi 0, %s245
      %s247 = sphi 0, %s245
      %s248 = sphi 0, %s247
      %s262 = sphi 0, %s248
      %s266 = sphi 0, %s266
      %s268 = sphi 0, %s266
      %s269 = sphi 0, %s268
      %s283 = sphi 0, %s269
      %s287 = sphi 0, %s287
      %s289 = sphi 0, %s287
      %s290 = sphi 0, %s289
      %s304 = sphi 0, %s290
      %s310 = sphi 0, %s312
      %s313 = sphi 0, %s310
      %s314 = sphi 0, %s313
      %s330 = sphi 0, %s314
    $region4: #{tpu_custom_call.1} parent=1 // loop_header_branch
      %25 = sbr.rel (%p23) target = $region8
    $region5: #{tpu_custom_call.1} parent=1 // loop_body
      %s27 = ssub.s32 %s22, 1
      %s28 = ssub.s32 %s22, 2
      %s29 = sadd.s32 %s22, 1
      %s30 = ssub.s32 %s22, %s29
      %p31 = scmp.eq.s32.totalorder %s30, 0
      %s33 = sadd.s32 %s32, 1
      %s34 = scalar_select %p31, %s32, %s33
      %p37 = pneg %p31
      %p38 = scmp.eq.s32.totalorder %s22, 1
      %p39 = por %p37, %p38
      %p40 = scmp.ne.s32.totalorder %s32, %s35
      %p41 = scmp.eq.s32.totalorder %s22, 0
      %p42 = por %p40, %p41
      %p43 = scmp.ne.s32.totalorder %s32, %s35
      %p44 = scmp.eq.s32.totalorder %s27, 1
      %p45 = por %p43, %p44
      %p46 = scmp.ne.s32.totalorder %s35, %s36
      %p47 = scmp.eq.s32.totalorder %s27, 0
      %p48 = por %p46, %p47
      %p49 = scmp.ne.s32.totalorder %s35, %s36
      %p50 = scmp.eq.s32.totalorder %s28, 1
      %p51 = por %p49, %p50
      %p53 = scmp.ne.s32.totalorder %s36, %s52
      %p54 = scmp.eq.s32.totalorder %s28, 0
      %p55 = por %p53, %p54
      %s57 = sadd.s32 %s56, 1
      %p60 = scmp.eq.s32.totalorder %s22, 1
      %p61 = scmp.ne.s32.totalorder %s56, %s58
      %p62 = scmp.eq.s32.totalorder %s22, 0
      %p63 = por %p61, %p62
      %p64 = scmp.ne.s32.totalorder %s56, %s58
      %p65 = scmp.eq.s32.totalorder %s27, 1
      %p66 = por %p64, %p65
      %p67 = scmp.ne.s32.totalorder %s58, %s59
      %p68 = scmp.eq.s32.totalorder %s27, 0
      %p69 = por %p67, %p68
      %p70 = scmp.ne.s32.totalorder %s58, %s59
      %p71 = scmp.eq.s32.totalorder %s28, 1
      %p72 = por %p70, %p71
      %p74 = scmp.ne.s32.totalorder %s59, %s73
      %p75 = scmp.eq.s32.totalorder %s28, 0
      %p76 = por %p74, %p75
      %s78 = sadd.s32 %s77, 1
      %p81 = scmp.eq.s32.totalorder %s22, 1
      %p82 = scmp.ne.s32.totalorder %s77, %s79
      %p83 = scmp.eq.s32.totalorder %s22, 0
      %p84 = por %p82, %p83
      %p85 = scmp.ne.s32.totalorder %s77, %s79
      %p86 = scmp.eq.s32.totalorder %s27, 1
      %p87 = por %p85, %p86
      %p88 = scmp.ne.s32.totalorder %s79, %s80
      %p89 = scmp.eq.s32.totalorder %s27, 0
      %p90 = por %p88, %p89
      %p91 = scmp.ne.s32.totalorder %s79, %s80
      %p92 = scmp.eq.s32.totalorder %s28, 1
      %p93 = por %p91, %p92
      %p95 = scmp.ne.s32.totalorder %s80, %s94
      %p96 = scmp.eq.s32.totalorder %s28, 0
      %p97 = por %p95, %p96
      %s99 = sadd.s32 %s98, 1
      %p102 = scmp.eq.s32.totalorder %s22, 1
      %p103 = scmp.ne.s32.totalorder %s98, %s100
      %p104 = scmp.eq.s32.totalorder %s22, 0
      %p105 = por %p103, %p104
      %p106 = scmp.ne.s32.totalorder %s98, %s100
      %p107 = scmp.eq.s32.totalorder %s27, 1
      %p108 = por %p106, %p107
      %p109 = scmp.ne.s32.totalorder %s100, %s101
      %p110 = scmp.eq.s32.totalorder %s27, 0
      %p111 = por %p109, %p110
      %p112 = scmp.ne.s32.totalorder %s100, %s101
      %p113 = scmp.eq.s32.totalorder %s28, 1
      %p114 = por %p112, %p113
      %p116 = scmp.ne.s32.totalorder %s101, %s115
      %p117 = scmp.eq.s32.totalorder %s28, 0
      %p118 = por %p116, %p117
      %s120 = sadd.s32 %s119, 1
      %p123 = scmp.eq.s32.totalorder %s22, 1
      %p124 = scmp.ne.s32.totalorder %s119, %s121
      %p125 = scmp.eq.s32.totalorder %s22, 0
      %p126 = por %p124, %p125
      %p127 = scmp.ne.s32.totalorder %s119, %s121
      %p128 = scmp.eq.s32.totalorder %s27, 1
      %p129 = por %p127, %p128
      %p130 = scmp.ne.s32.totalorder %s121, %s122
      %p131 = scmp.eq.s32.totalorder %s27, 0
      %p132 = por %p130, %p131
      %p133 = scmp.ne.s32.totalorder %s121, %s122
      %p134 = scmp.eq.s32.totalorder %s28, 1
      %p135 = por %p133, %p134
      %p137 = scmp.ne.s32.totalorder %s122, %s136
      %p138 = scmp.eq.s32.totalorder %s28, 0
      %p139 = por %p137, %p138
      %s141 = sadd.s32 %s140, 1
      %p144 = scmp.eq.s32.totalorder %s22, 1
      %p145 = scmp.ne.s32.totalorder %s140, %s142
      %p146 = scmp.eq.s32.totalorder %s22, 0
      %p147 = por %p145, %p146
      %p148 = scmp.ne.s32.totalorder %s140, %s142
      %p149 = scmp.eq.s32.totalorder %s27, 1
      %p150 = por %p148, %p149
      %p151 = scmp.ne.s32.totalorder %s142, %s143
      %p152 = scmp.eq.s32.totalorder %s27, 0
      %p153 = por %p151, %p152
      %p154 = scmp.ne.s32.totalorder %s142, %s143
      %p155 = scmp.eq.s32.totalorder %s28, 1
      %p156 = por %p154, %p155
      %p158 = scmp.ne.s32.totalorder %s143, %s157
      %p159 = scmp.eq.s32.totalorder %s28, 0
      %p160 = por %p158, %p159
      %s162 = sadd.s32 %s161, 1
      %p165 = scmp.eq.s32.totalorder %s22, 1
      %p166 = scmp.ne.s32.totalorder %s161, %s163
      %p167 = scmp.eq.s32.totalorder %s22, 0
      %p168 = por %p166, %p167
      %p169 = scmp.ne.s32.totalorder %s161, %s163
      %p170 = scmp.eq.s32.totalorder %s27, 1
      %p171 = por %p169, %p170
      %p172 = scmp.ne.s32.totalorder %s163, %s164
      %p173 = scmp.eq.s32.totalorder %s27, 0
      %p174 = por %p172, %p173
      %p175 = scmp.ne.s32.totalorder %s163, %s164
      %p176 = scmp.eq.s32.totalorder %s28, 1
      %p177 = por %p175, %p176
      %p179 = scmp.ne.s32.totalorder %s164, %s178
      %p180 = scmp.eq.s32.totalorder %s28, 0
      %p181 = por %p179, %p180
      %s183 = sadd.s32 %s182, 1
      %p186 = scmp.eq.s32.totalorder %s22, 1
      %p187 = scmp.ne.s32.totalorder %s182, %s184
      %p188 = scmp.eq.s32.totalorder %s22, 0
      %p189 = por %p187, %p188
      %p190 = scmp.ne.s32.totalorder %s182, %s184
      %p191 = scmp.eq.s32.totalorder %s27, 1
      %p192 = por %p190, %p191
      %p193 = scmp.ne.s32.totalorder %s184, %s185
      %p194 = scmp.eq.s32.totalorder %s27, 0
      %p195 = por %p193, %p194
      %p196 = scmp.ne.s32.totalorder %s184, %s185
      %p197 = scmp.eq.s32.totalorder %s28, 1
      %p198 = por %p196, %p197
      %p200 = scmp.ne.s32.totalorder %s185, %s199
      %p201 = scmp.eq.s32.totalorder %s28, 0
      %p202 = por %p200, %p201
      %s204 = sadd.s32 %s203, 1
      %p207 = scmp.eq.s32.totalorder %s22, 1
      %p208 = scmp.ne.s32.totalorder %s203, %s205
      %p209 = scmp.eq.s32.totalorder %s22, 0
      %p210 = por %p208, %p209
      %p211 = scmp.ne.s32.totalorder %s203, %s205
      %p212 = scmp.eq.s32.totalorder %s27, 1
      %p213 = por %p211, %p212
      %p214 = scmp.ne.s32.totalorder %s205, %s206
      %p215 = scmp.eq.s32.totalorder %s27, 0
      %p216 = por %p214, %p215
      %p217 = scmp.ne.s32.totalorder %s205, %s206
      %p218 = scmp.eq.s32.totalorder %s28, 1
      %p219 = por %p217, %p218
      %p221 = scmp.ne.s32.totalorder %s206, %s220
      %p222 = scmp.eq.s32.totalorder %s28, 0
      %p223 = por %p221, %p222
      %s225 = sadd.s32 %s224, 1
      %p228 = scmp.eq.s32.totalorder %s22, 1
      %p229 = scmp.ne.s32.totalorder %s224, %s226
      %p230 = scmp.eq.s32.totalorder %s22, 0
      %p231 = por %p229, %p230
      %p232 = scmp.ne.s32.totalorder %s224, %s226
      %p233 = scmp.eq.s32.totalorder %s27, 1
      %p234 = por %p232, %p233
      %p235 = scmp.ne.s32.totalorder %s226, %s227
      %p236 = scmp.eq.s32.totalorder %s27, 0
      %p237 = por %p235, %p236
      %p238 = scmp.ne.s32.totalorder %s226, %s227
      %p239 = scmp.eq.s32.totalorder %s28, 1
      %p240 = por %p238, %p239
      %p242 = scmp.ne.s32.totalorder %s227, %s241
      %p243 = scmp.eq.s32.totalorder %s28, 0
      %p244 = por %p242, %p243
      %s246 = sadd.s32 %s245, 1
      %p249 = scmp.eq.s32.totalorder %s22, 1
      %p250 = scmp.ne.s32.totalorder %s245, %s247
      %p251 = scmp.eq.s32.totalorder %s22, 0
      %p252 = por %p250, %p251
      %p253 = scmp.ne.s32.totalorder %s245, %s247
      %p254 = scmp.eq.s32.totalorder %s27, 1
      %p255 = por %p253, %p254
      %p256 = scmp.ne.s32.totalorder %s247, %s248
      %p257 = scmp.eq.s32.totalorder %s27, 0
      %p258 = por %p256, %p257
      %p259 = scmp.ne.s32.totalorder %s247, %s248
      %p260 = scmp.eq.s32.totalorder %s28, 1
      %p261 = por %p259, %p260
      %p263 = scmp.ne.s32.totalorder %s248, %s262
      %p264 = scmp.eq.s32.totalorder %s28, 0
      %p265 = por %p263, %p264
      %s267 = sadd.s32 %s266, 1
      %p270 = scmp.eq.s32.totalorder %s22, 1
      %p271 = scmp.ne.s32.totalorder %s266, %s268
      %p272 = scmp.eq.s32.totalorder %s22, 0
      %p273 = por %p271, %p272
      %p274 = scmp.ne.s32.totalorder %s266, %s268
      %p275 = scmp.eq.s32.totalorder %s27, 1
      %p276 = por %p274, %p275
      %p277 = scmp.ne.s32.totalorder %s268, %s269
      %p278 = scmp.eq.s32.totalorder %s27, 0
      %p279 = por %p277, %p278
      %p280 = scmp.ne.s32.totalorder %s268, %s269
      %p281 = scmp.eq.s32.totalorder %s28, 1
      %p282 = por %p280, %p281
      %p284 = scmp.ne.s32.totalorder %s269, %s283
      %p285 = scmp.eq.s32.totalorder %s28, 0
      %p286 = por %p284, %p285
      %s288 = sadd.s32 %s287, 1
      %p291 = scmp.eq.s32.totalorder %s22, 1
      %p292 = scmp.ne.s32.totalorder %s287, %s289
      %p293 = scmp.eq.s32.totalorder %s22, 0
      %p294 = por %p292, %p293
      %p295 = scmp.ne.s32.totalorder %s287, %s289
      %p296 = scmp.eq.s32.totalorder %s27, 1
      %p297 = por %p295, %p296
      %p298 = scmp.ne.s32.totalorder %s289, %s290
      %p299 = scmp.eq.s32.totalorder %s27, 0
      %p300 = por %p298, %p299
      %p301 = scmp.ne.s32.totalorder %s289, %s290
      %p302 = scmp.eq.s32.totalorder %s28, 1
      %p303 = por %p301, %p302
      %p305 = scmp.ne.s32.totalorder %s290, %s304
      %p306 = scmp.eq.s32.totalorder %s28, 0
      %p307 = por %p305, %p306
      %s308 = ssub.s32 %s22, %s29
      %p309 = scmp.eq.s32.totalorder %s308, 0
      %s311 = sadd.s32 %s310, 1
      %s312 = scalar_select %p309, %s310, %s311
      %p315 = pneg %p309
      %p316 = scmp.eq.s32.totalorder %s22, 1
      %p317 = por %p315, %p316
      %p318 = scmp.ne.s32.totalorder %s310, %s313
      %p319 = scmp.eq.s32.totalorder %s22, 0
      %p320 = por %p318, %p319
      %p321 = scmp.ne.s32.totalorder %s310, %s313
      %p322 = scmp.eq.s32.totalorder %s27, 1
      %p323 = por %p321, %p322
      %p324 = scmp.ne.s32.totalorder %s313, %s314
      %p325 = scmp.eq.s32.totalorder %s27, 0
      %p326 = por %p324, %p325
      %p327 = scmp.ne.s32.totalorder %s313, %s314
      %p328 = scmp.eq.s32.totalorder %s28, 1
      %p329 = por %p327, %p328
      %p331 = scmp.ne.s32.totalorder %s314, %s330
      %p332 = scmp.eq.s32.totalorder %s28, 0
      %p333 = por %p331, %p332
      %p334 = scmp.le.s32.totalorder 1, %s22
      %p335 = scmp.lt.s32.totalorder %s22, 3
      %p336 = pnand %p334, %p335
      %p337 = pneg %p336
      // Predicated region
      $region9: #{tpu_custom_call.1} parent=5 // pred_check
        _
      $region10: #{tpu_custom_call.1} parent=5 // pred_check_branch
        %339 = sbr.rel (%p336) target = $region12
      $region11: #{tpu_custom_call.1} parent=5 // pred_region
        %s340 = ssub.s32 %s22, 1
        // Predicated region
        $region13: #{tpu_custom_call.1} parent=11 // pred_check
          %p341 = pneg %p69
        $region14: #{tpu_custom_call.1} parent=11 // pred_check_branch
          %343 = sbr.rel (%p341) target = $region16
        $region15: #{tpu_custom_call.1} parent=11 // pred_region
          _
        $region16: #{tpu_custom_call.1} parent=11 // pred_fallthru
          _
        // Predicated region
        $region17: #{tpu_custom_call.1} parent=11 // pred_check
          %p344 = pneg %p90
        $region18: #{tpu_custom_call.1} parent=11 // pred_check_branch
          %346 = sbr.rel (%p344) target = $region20
        $region19: #{tpu_custom_call.1} parent=11 // pred_region
          _
        $region20: #{tpu_custom_call.1} parent=11 // pred_fallthru
          _
        // Predicated region
        $region21: #{tpu_custom_call.1} parent=11 // pred_check
          %p347 = pneg %p111
        $region22: #{tpu_custom_call.1} parent=11 // pred_check_branch
          %349 = sbr.rel (%p347) target = $region24
        $region23: #{tpu_custom_call.1} parent=11 // pred_region
          _
        $region24: #{tpu_custom_call.1} parent=11 // pred_fallthru
          _
        // Predicated region
        $region25: #{tpu_custom_call.1} parent=11 // pred_check
          %p350 = pneg %p132
        $region26: #{tpu_custom_call.1} parent=11 // pred_check_branch
          %352 = sbr.rel (%p350) target = $region28
        $region27: #{tpu_custom_call.1} parent=11 // pred_region
          _
        $region28: #{tpu_custom_call.1} parent=11 // pred_fallthru
          _
        // Predicated region
        $region29: #{tpu_custom_call.1} parent=11 // pred_check
          %p353 = pneg %p153
        $region30: #{tpu_custom_call.1} parent=11 // pred_check_branch
          %355 = sbr.rel (%p353) target = $region32
        $region31: #{tpu_custom_call.1} parent=11 // pred_region
          _
        $region32: #{tpu_custom_call.1} parent=11 // pred_fallthru
          _
        // Predicated region
        $region33: #{tpu_custom_call.1} parent=11 // pred_check
          %p356 = pneg %p174
        $region34: #{tpu_custom_call.1} parent=11 // pred_check_branch
          %358 = sbr.rel (%p356) target = $region36
        $region35: #{tpu_custom_call.1} parent=11 // pred_region
          _
        $region36: #{tpu_custom_call.1} parent=11 // pred_fallthru
          _
        // Predicated region
        $region37: #{tpu_custom_call.1} parent=11 // pred_check
          %p359 = pneg %p195
        $region38: #{tpu_custom_call.1} parent=11 // pred_check_branch
          %361 = sbr.rel (%p359) target = $region40
        $region39: #{tpu_custom_call.1} parent=11 // pred_region
          _
        $region40: #{tpu_custom_call.1} parent=11 // pred_fallthru
          _
        // Predicated region
        $region41: #{tpu_custom_call.1} parent=11 // pred_check
          %p362 = pneg %p216
        $region42: #{tpu_custom_call.1} parent=11 // pred_check_branch
          %364 = sbr.rel (%p362) target = $region44
        $region43: #{tpu_custom_call.1} parent=11 // pred_region
          _
        $region44: #{tpu_custom_call.1} parent=11 // pred_fallthru
          _
        // Predicated region
        $region45: #{tpu_custom_call.1} parent=11 // pred_check
          %p365 = pneg %p237
        $region46: #{tpu_custom_call.1} parent=11 // pred_check_branch
          %367 = sbr.rel (%p365) target = $region48
        $region47: #{tpu_custom_call.1} parent=11 // pred_region
          _
        $region48: #{tpu_custom_call.1} parent=11 // pred_fallthru
          _
        // Predicated region
        $region49: #{tpu_custom_call.1} parent=11 // pred_check
          %p368 = pneg %p258
        $region50: #{tpu_custom_call.1} parent=11 // pred_check_branch
          %370 = sbr.rel (%p368) target = $region52
        $region51: #{tpu_custom_call.1} parent=11 // pred_region
          _
        $region52: #{tpu_custom_call.1} parent=11 // pred_fallthru
          _
        // Predicated region
        $region53: #{tpu_custom_call.1} parent=11 // pred_check
          %p371 = pneg %p279
        $region54: #{tpu_custom_call.1} parent=11 // pred_check_branch
          %373 = sbr.rel (%p371) target = $region56
        $region55: #{tpu_custom_call.1} parent=11 // pred_region
          _
        $region56: #{tpu_custom_call.1} parent=11 // pred_fallthru
          _
        // Predicated region
        $region57: #{tpu_custom_call.1} parent=11 // pred_check
          %p374 = pneg %p300
        $region58: #{tpu_custom_call.1} parent=11 // pred_check_branch
          %376 = sbr.rel (%p374) target = $region60
        $region59: #{tpu_custom_call.1} parent=11 // pred_region
          _
        $region60: #{tpu_custom_call.1} parent=11 // pred_fallthru
          _
      $region12: #{tpu_custom_call.1} parent=5 // pred_fallthru
        _
      %p377 = scmp.lt.s32.totalorder %s22, 2
      // Predicated region
      $region61: #{tpu_custom_call.1} parent=5 // pred_check
        %p378 = pneg %p377
      $region62: #{tpu_custom_call.1} parent=5 // pred_check_branch
        %380 = sbr.rel (%p378) target = $region64
      $region63: #{tpu_custom_call.1} parent=5 // pred_region
        // Predicated region
        $region65: #{tpu_custom_call.1} parent=63 // pred_check
          %p381 = pneg %p42
        $region66: #{tpu_custom_call.1} parent=63 // pred_check_branch
          %383 = sbr.rel (%p381) target = $region68
        $region67: #{tpu_custom_call.1} parent=63 // pred_region
          %p384 = scmp.lt.s32.totalorder %s22, 1
          %s385 = scalar_select %p384, %s22, 1
          %s386 = smul.addr %s385, 2
          %s387 = smul.addr %s386, 4
          %s388 = scalar_lea.vmem %s0, %s387
        $region68: #{tpu_custom_call.1} parent=63 // pred_fallthru
          _
      $region64: #{tpu_custom_call.1} parent=5 // pred_fallthru
        _
      %p389 = scmp.le.s32.totalorder 1, %s22
      %p390 = scmp.lt.s32.totalorder %s22, 3
      %p391 = pnand %p389, %p390
      %p392 = pneg %p391
      // Predicated region
      $region69: #{tpu_custom_call.1} parent=5 // pred_check
        _
      $region70: #{tpu_custom_call.1} parent=5 // pred_check_branch
        %394 = sbr.rel (%p391) target = $region72
      $region71: #{tpu_custom_call.1} parent=5 // pred_region
        %s395 = ssub.s32 %s22, 1
        %p396 = scmp.lt.s32.totalorder %s27, 1
        %s397 = scalar_select %p396, %s27, 1
        %s398 = smul.addr %s397, 2
        %s399 = smul.addr %s398, 4
        %s400 = scalar_lea.vmem %s0, %s399
        %p401 = pneg %p48
        %p402 = pneg %p45
        %p403 = pneg %p69
        %p404 = pneg %p66
        %p405 = pneg %p90
        %p406 = pneg %p87
        %p407 = pneg %p111
        %p408 = pneg %p108
        %p409 = pneg %p132
        %p410 = pneg %p129
        %p411 = pneg %p153
        %p412 = pneg %p150
        %p413 = pneg %p174
        %p414 = pneg %p171
        %p415 = pneg %p195
        %p416 = pneg %p192
        %p417 = pneg %p216
        %p418 = pneg %p213
        %p419 = pneg %p237
        %p420 = pneg %p234
        %p421 = pneg %p258
        %p422 = pneg %p255
        %p423 = pneg %p279
        %p424 = pneg %p276
        %p425 = pneg %p300
        %p426 = pneg %p297
        %p427 = pneg %p326
        %p428 = pneg %p323
        %s429 = sand.u32 %s313, 1
        %s430 = scalar_lea.sflag [#allocation3], %s429
        %s431 = sand.u32 %s313, 1
        %s432 = smul.addr %s431, 8
        %s433 = scalar_lea.vmem [#allocation2], %s432
        %p434 = scmp.lt.s32.totalorder %s27, 1
        %s435 = scalar_select %p434, %s27, 1
        %s436 = smul.addr %s435, 2
        %s437 = smul.addr %s436, 4
        %s438 = scalar_lea.vmem %s0, %s437
        %v439 = vld [vmem:[%s438] sm:$0xff]
        %v440 = vld [vmem:[%s12] sm:$0xff]
        %v441 = vld [vmem:[%s12 + $0x8] sm:$0xff]
        %v442 = vld [vmem:[%s12 + $0x10] sm:$0xff]
        %v443 = vld [vmem:[%s12 + $0x18] sm:$0xff]
        %v444 = vld [vmem:[%s12 + $0x20] sm:$0xff]
        %v445 = vld [vmem:[%s12 + $0x28] sm:$0xff]
        %v446 = vld [vmem:[%s12 + $0x30] sm:$0xff]
        %v447 = vld [vmem:[%s12 + $0x38] sm:$0xff]
        %v448 = vld [vmem:[%s12 + $0x40] sm:$0xff]
        %v449 = vld [vmem:[%s12 + $0x48] sm:$0xff]
        %v450 = vld [vmem:[%s12 + $0x50] sm:$0xff]
        %v451 = vld [vmem:[%s12 + $0x58] sm:$0xff]
        %v452 = vld [vmem:[%s12 + $0x60] sm:$0xff]
        %v453 = vld [vmem:[%s12 + $0x68] sm:$0xff]
        %v454 = vld [vmem:[%s12 + $0x70] sm:$0xff]
        %v455 = vld [vmem:[%s12 + $0x78] sm:$0xff]
        %v456 = vld [vmem:[%s12 + $0x80] sm:$0xff]
        %v457 = vld [vmem:[%s12 + $0x88] sm:$0xff]
        %v458 = vld [vmem:[%s12 + $0x90] sm:$0xff]
        %v459 = vld [vmem:[%s12 + $0x98] sm:$0xff]
        %v460 = vld [vmem:[%s12 + $0xa0] sm:$0xff]
        %v461 = vld [vmem:[%s12 + $0xa8] sm:$0xff]
        %v462 = vld [vmem:[%s12 + $0xb0] sm:$0xff]
        %v463 = vld [vmem:[%s12 + $0xb8] sm:$0xff]
        %v464 = vld [vmem:[%s12 + $0xc0] sm:$0xff]
        %v465 = vld [vmem:[%s12 + $0xc8] sm:$0xff]
        %v466 = vld [vmem:[%s12 + $0xd0] sm:$0xff]
        %v467 = vld [vmem:[%s12 + $0xd8] sm:$0xff]
        %v468 = vld [vmem:[%s12 + $0xe0] sm:$0xff]
        %v469 = vld [vmem:[%s12 + $0xe8] sm:$0xff]
        %v470 = vld [vmem:[%s12 + $0xf0] sm:$0xff]
        %v471 = vld [vmem:[%s12 + $0xf8] sm:$0xff]
        %v473 = vcombine.high %v439, %v439
        %475 = vmatprep.subr.mxu0 0.0
        %476 = vmatpush1.msra.mxu0 %v455
        %477 = vmatprep.subr.mxu0 0.0
        %478 = vmatpush1.msra.mxu0 %v454
        %479 = vmatprep.subr.mxu0 0.0
        %480 = vmatpush1.msra.mxu0 %v453
        %481 = vmatprep.subr.mxu0 0.0
        %482 = vmatpush1.msra.mxu0 %v452
        %483 = vmatprep.subr.mxu0 0.0
        %484 = vmatpush1.msra.mxu0 %v451
        %485 = vmatprep.subr.mxu0 0.0
        %486 = vmatpush1.msra.mxu0 %v450
        %487 = vmatprep.subr.mxu0 0.0
        %488 = vmatpush1.msra.mxu0 %v449
        %489 = vmatprep.subr.mxu0 0.0
        %490 = vmatpush1.msra.mxu0 %v448
        %491 = vmatprep.subr.mxu0 0.0
        %492 = vmatpush1.msra.mxu0 %v447
        %493 = vmatprep.subr.mxu0 0.0
        %494 = vmatpush1.msra.mxu0 %v446
        %495 = vmatprep.subr.mxu0 0.0
        %496 = vmatpush1.msra.mxu0 %v445
        %497 = vmatprep.subr.mxu0 0.0
        %498 = vmatpush1.msra.mxu0 %v444
        %499 = vmatprep.subr.mxu0 0.0
        %500 = vmatpush1.msra.mxu0 %v443
        %501 = vmatprep.subr.mxu0 0.0
        %502 = vmatpush1.msra.mxu0 %v442
        %503 = vmatprep.subr.mxu0 0.0
        %504 = vmatpush1.msra.mxu0 %v441
        %505 = vmatprep.subr.mxu0 0.0
        %506 = vmatpush1.msra.mxu0 %v440
        %507 = vmatprep.subr.mxu0 0.0
        %508 = vmatpush2.msra.mxu0 %v471
        %509 = vmatprep.subr.mxu0 0.0
        %510 = vmatpush2.msra.mxu0 %v470
        %511 = vmatprep.subr.mxu0 0.0
        %512 = vmatpush2.msra.mxu0 %v469
        %513 = vmatprep.subr.mxu0 0.0
        %514 = vmatpush2.msra.mxu0 %v468
        %515 = vmatprep.subr.mxu0 0.0
        %516 = vmatpush2.msra.mxu0 %v467
        %517 = vmatprep.subr.mxu0 0.0
        %518 = vmatpush2.msra.mxu0 %v466
        %519 = vmatprep.subr.mxu0 0.0
        %520 = vmatpush2.msra.mxu0 %v465
        %521 = vmatprep.subr.mxu0 0.0
        %522 = vmatpush2.msra.mxu0 %v464
        %523 = vmatprep.subr.mxu0 0.0
        %524 = vmatpush2.msra.mxu0 %v463
        %525 = vmatprep.subr.mxu0 0.0
        %526 = vmatpush2.msra.mxu0 %v462
        %527 = vmatprep.subr.mxu0 0.0
        %528 = vmatpush2.msra.mxu0 %v461
        %529 = vmatprep.subr.mxu0 0.0
        %530 = vmatpush2.msra.mxu0 %v460
        %531 = vmatprep.subr.mxu0 0.0
        %532 = vmatpush2.msra.mxu0 %v459
        %533 = vmatprep.subr.mxu0 0.0
        %534 = vmatpush2.msra.mxu0 %v458
        %535 = vmatprep.subr.mxu0 0.0
        %536 = vmatpush2.msra.mxu0 %v457
        %537 = vmatprep.subr.mxu0 0.0
        %538 = vmatpush2.msra.mxu0 %v456
        %539 = vmatprep.mubr.f32.mxu0 %v473
        %540 = vmatmul.mubr.f32.gmra.mxu0 %v439
        %v541 = vpop.f32.mrf.mxu0
        %v542 = vadd.f32 0.0, %v541
        %v543 = vpop.f32.mrf.mxu0
        %544 = vdwg.mxu0
        %v545 = vld [vmem:[%s1] sm:$0xff]
        %v546 = vld [vmem:[%s6] sm:$0xf]
        %v547 = vld [vmem:[%s7] sm:$0xf]
        %vm548 = vcmask 1043456
        %v549 = vsel %vm548, %v439, 0.0
        %v550 = vsel %vm548, %v473, 0.0
        %v551 = vadd.f32 %v549, %v550
        %552 = vadd.xlane.f32.xlu0 %v551
        %v553 = vpop.xlane.xlu0 %552
        %v554 = vrcp.pop 256.0
        %v555 = vmul.f32 %v553, %v554
        %v558 = vunpack.c.l.s4 839922192
        %v559 = vunpack.c.0.s8 %v558
        %v560 = vlaneseq
        %v561 = vshrl.u32 %v560, 7
        %v562 = vsub.s32 %v559, %v561
        %v563 = vrot.slane %v555, %v562
        %v565 = vsub.f32 %v439, %v563
        %v566 = vmul.f32 %v565, %v565
        %v568 = vcombine.high %v566, %v566
        %v570 = vsel %vm548, %v566, 0.0
        %v571 = vsel %vm548, %v568, 0.0
        %v572 = vadd.f32 %v570, %v571
        %573 = vadd.xlane.f32.xlu0 %v572
        %v574 = vpop.xlane.xlu0 %573
        %v575 = vmul.f32 %v574, %v554
        %v576 = vadd.f32 %v575, 1e-05
        %v577 = vrsqrt.pop %v576
        %v580 = vunpack.c.l.s4 839922192
        %v581 = vunpack.c.0.s8 %v580
        %v582 = vlaneseq
        %v583 = vshrl.u32 %v582, 7
        %v584 = vsub.s32 %v581, %v583
        %v585 = vrot.slane %v577, %v584
        %v587 = vmul.f32 %v565, %v585
        %589 = vset.pattern.permute.xlu0 0
        %590 = vperm.xlu0 %589, %v546
        %v591 = vpop.permute.xlu0 %590
        %v593 = vunpack.c.l.s4 839922192
        %v594 = vunpack.c.0.s8 %v593
        %v595 = vlaneseq
        %v596 = vshrl.u32 %v595, 7
        %v597 = vsub.s32 %v594, %v596
        %v598 = vrot.slane %v591, %v597
        %v600 = vmul.f32 %v587, %v598
        %602 = vset.pattern.permute.xlu0 0
        %603 = vperm.xlu0 %602, %v547
        %v604 = vpop.permute.xlu0 %603
        %v606 = vunpack.c.l.s4 839922192
        %v607 = vunpack.c.0.s8 %v606
        %v608 = vlaneseq
        %v609 = vshrl.u32 %v608, 7
        %v610 = vsub.s32 %v607, %v609
        %v611 = vrot.slane %v604, %v610
        %v613 = vadd.f32 %v600, %v611
        %vm614 = vcmp.ge.f32.partialorder %v613, 0.0
        %v615 = vmul.f32 %v613, 0.2
        %v616 = vsel %vm614, %v613, %v615
        %v617 = vld [vmem:[%s2] sm:$0xff]
        %v618 = vld [vmem:[%s2 + $0x8] sm:$0xff]
        %v619 = vld [vmem:[%s2 + $0x10] sm:$0xff]
        %v620 = vld [vmem:[%s2 + $0x18] sm:$0xff]
        %v621 = vld [vmem:[%s2 + $0x20] sm:$0xf]
        %v623 = vcombine.high %v616, %v616
        %vm624 = vcmask 31744
        %v626 = vsel %vm624, %v617, 0
        %v629 = vsel %vm624, %v618, 0
        %v632 = vsel %vm624, %v619, 0
        %v635 = vsel %vm624, %v620, 0
        %v638 = vsel %vm624, %v621, 0
        %v640 = vsel %vm548, %v616, 0
        %v642 = vsel %vm548, %v623, 0
        %644 = vmatprep.subr.mxu0 0.0
        %645 = vmatpush1.msra.mxu0 0.0
        %646 = vmatprep.subr.mxu0 0.0
        %647 = vmatpush1.msra.mxu0 0.0
        %648 = vmatprep.subr.mxu0 0.0
        %649 = vmatpush1.msra.mxu0 0.0
        %650 = vmatprep.subr.mxu0 0.0
        %651 = vmatpush1.msra.mxu0 0.0
        %652 = vmatprep.subr.mxu0 0.0
        %653 = vmatpush1.msra.mxu0 0.0
        %654 = vmatprep.subr.mxu0 0.0
        %655 = vmatpush1.msra.mxu0 0.0
        %656 = vmatprep.subr.mxu0 0.0
        %657 = vmatpush1.msra.mxu0 0.0
        %658 = vmatprep.subr.mxu0 0.0
        %659 = vmatpush1.msra.mxu0 0.0
        %660 = vmatprep.subr.mxu0 0.0
        %661 = vmatpush1.msra.mxu0 0.0
        %662 = vmatprep.subr.mxu0 0.0
        %663 = vmatpush1.msra.mxu0 0.0
        %664 = vmatprep.subr.mxu0 0.0
        %665 = vmatpush1.msra.mxu0 0.0
        %666 = vmatprep.subr.mxu0 0.0
        %667 = vmatpush1.msra.mxu0 0.0
        %668 = vmatprep.subr.mxu0 0.0
        %669 = vmatpush1.msra.mxu0 0.0
        %670 = vmatprep.subr.mxu0 0.0
        %671 = vmatpush1.msra.mxu0 0.0
        %672 = vmatprep.subr.mxu0 0.0
        %673 = vmatpush1.msra.mxu0 0.0
        %674 = vmatprep.subr.mxu0 %v642
        %675 = vmatpush1.msra.mxu0 %v640
        %676 = vmatprep.subr.mxu0 0.0
        %677 = vmatpush2.msra.mxu0 0.0
        %678 = vmatprep.subr.mxu0 0.0
        %679 = vmatpush2.msra.mxu0 0.0
        %680 = vmatprep.subr.mxu0 0.0
        %681 = vmatpush2.msra.mxu0 0.0
        %682 = vmatprep.subr.mxu0 0.0
        %683 = vmatpush2.msra.mxu0 0.0
        %684 = vmatprep.subr.mxu0 0.0
        %685 = vmatpush2.msra.mxu0 0.0
        %686 = vmatprep.subr.mxu0 0.0
        %687 = vmatpush2.msra.mxu0 0.0
        %688 = vmatprep.subr.mxu0 0.0
        %689 = vmatpush2.msra.mxu0 0.0
        %690 = vmatprep.subr.mxu0 0.0
        %691 = vmatpush2.msra.mxu0 0.0
        %692 = vmatprep.subr.mxu0 0.0
        %693 = vmatpush2.msra.mxu0 0.0
        %694 = vmatprep.subr.mxu0 0.0
        %695 = vmatpush2.msra.mxu0 0.0
        %696 = vmatprep.subr.mxu0 0.0
        %697 = vmatpush2.msra.mxu0 0.0
        %698 = vmatprep.subr.mxu0 0.0
        %699 = vmatpush2.msra.mxu0 0.0
        %700 = vmatprep.subr.mxu0 0.0
        %701 = vmatpush2.msra.mxu0 0.0
        %702 = vmatprep.subr.mxu0 0.0
        %703 = vmatpush2.msra.mxu0 0.0
        %704 = vmatprep.subr.mxu0 0.0
        %705 = vmatpush2.msra.mxu0 0.0
        %706 = vmatprep.subr.mxu0 0.0
        %707 = vmatpush2.msra.mxu0 0.0
        %708 = vmatprep.mubr.f32.mxu0 0.0
        %709 = vmatmul.mubr.f32.gmra.mxu0 %v626
        %v710 = vpop.f32.mrf.mxu0
        %v711 = vadd.f32 0.0, %v710
        %v712 = vpop.f32.mrf.mxu0
        %v713 = vadd.f32 0.0, %v712
        %714 = vmatprep.mubr.f32.mxu0 0.0
        %715 = vmatmul.mubr.f32.gmra.mxu0 %v629
        %v716 = vpop.f32.mrf.mxu0
        %v717 = vadd.f32 0.0, %v716
        %v718 = vpop.f32.mrf.mxu0
        %v719 = vadd.f32 0.0, %v718
        %720 = vmatprep.mubr.f32.mxu0 0.0
        %721 = vmatmul.mubr.f32.gmra.mxu0 %v632
        %v722 = vpop.f32.mrf.mxu0
        %v723 = vadd.f32 0.0, %v722
        %v724 = vpop.f32.mrf.mxu0
        %v725 = vadd.f32 0.0, %v724
        %726 = vmatprep.mubr.f32.mxu0 0.0
        %727 = vmatmul.mubr.f32.gmra.mxu0 %v635
        %v728 = vpop.f32.mrf.mxu0
        %v729 = vadd.f32 0.0, %v728
        %v730 = vpop.f32.mrf.mxu0
        %v731 = vadd.f32 0.0, %v730
        %732 = vmatprep.mubr.f32.mxu0 0.0
        %733 = vmatmul.mubr.f32.gmra.mxu0 %v638
        %v734 = vpop.f32.mrf.mxu0
        %v735 = vadd.f32 0.0, %v734
        %v736 = vpop.f32.mrf.mxu0
        %v737 = vadd.f32 0.0, %v736
        %738 = vdwg.mxu0
        %v739 = vld [vmem:[%s10] sm:$0x3]
        %v740 = vld [vmem:[%s10 + $0x2] sm:$0x3]
        %v741 = vld [vmem:[%s10 + $0x4] sm:$0x3]
        %v742 = vld [vmem:[%s10 + $0x6] sm:$0x3]
        %v743 = vld [vmem:[%s10 + $0xa] sm:$0x3]
        %v744 = vld [vmem:[%s10 + $0xc] sm:$0x3]
        %v745 = vld [vmem:[%s10 + $0xe] sm:$0x3]
        %v746 = vld [vmem:[%s10 + $0x10] sm:$0x3]
        %747 = vrot.lane.b32.xlu0 %v711, 17
        %v748 = vpop.permute.xlu0 %747
        %749 = vrot.lane.b32.xlu0 %v713, 17
        %v750 = vpop.permute.xlu0 %749
        %v751 = vlaneseq
        %v752 = vand.u32 %v751, 127
        %vm753 = vcmp.lt.s32.totalorder %v752, 17
        %v754 = vsel %vm753, %v748, %v750
        %v755 = vsel %vm753, %v750, %v748
        %v757 = vlaneseq
        %v758 = vshrl.u32 %v757, 7
        %v759 = vsub.s32 0, %v758
        %v760 = vrot.slane %v739, %v759
        %v761 = vlaneseq
        %v762 = vshrl.u32 %v761, 7
        %v763 = vsub.s32 1, %v762
        %v764 = vrot.slane %v739, %v763
        %v767 = vmul.f32 %v755, %v760
        %v768 = vmul.f32 %v754, %v764
        %v769 = vadd.f32 %v723, %v767
        %v770 = vadd.f32 %v725, %v768
        %v773 = vrot.slane %v711, 4
        %v774 = vrot.slane %v713, 4
        %777 = vrot.lane.b32.xlu0 %v773, 16
        %v778 = vpop.permute.xlu0 %777
        %779 = vrot.lane.b32.xlu0 %v774, 16
        %v780 = vpop.permute.xlu0 %779
        %vm781 = vcmp.lt.s32.totalorder %v752, 16
        %v782 = vsel %vm781, %v778, %v780
        %v783 = vsel %vm781, %v780, %v778
        %v785 = vlaneseq
        %v786 = vshrl.u32 %v785, 7
        %v787 = vsub.s32 0, %v786
        %v788 = vrot.slane %v740, %v787
        %v789 = vlaneseq
        %v790 = vshrl.u32 %v789, 7
        %v791 = vsub.s32 1, %v790
        %v792 = vrot.slane %v740, %v791
        %v795 = vmul.f32 %v783, %v788
        %v796 = vmul.f32 %v782, %v792
        %v797 = vadd.f32 %v769, %v795
        %v798 = vadd.f32 %v770, %v796
        %799 = vrot.lane.b32.xlu0 %v717, 15
        %v800 = vpop.permute.xlu0 %799
        %801 = vrot.lane.b32.xlu0 %v719, 15
        %v802 = vpop.permute.xlu0 %801
        %vm803 = vcmp.lt.s32.totalorder %v752, 15
        %v804 = vsel %vm803, %v800, %v802
        %v805 = vsel %vm803, %v802, %v800
        %v807 = vlaneseq
        %v808 = vshrl.u32 %v807, 7
        %v809 = vsub.s32 0, %v808
        %v810 = vrot.slane %v741, %v809
        %v811 = vlaneseq
        %v812 = vshrl.u32 %v811, 7
        %v813 = vsub.s32 1, %v812
        %v814 = vrot.slane %v741, %v813
        %v817 = vmul.f32 %v805, %v810
        %v818 = vmul.f32 %v804, %v814
        %v819 = vadd.f32 %v797, %v817
        %v820 = vadd.f32 %v798, %v818
        %v823 = vrot.slane %v717, 4
        %v824 = vrot.slane %v719, 4
        %827 = vrot.lane.b32.xlu0 %v823, 1
        %v828 = vpop.permute.xlu0 %827
        %829 = vrot.lane.b32.xlu0 %v824, 1
        %v830 = vpop.permute.xlu0 %829
        %vm831 = vcmp.lt.s32.totalorder %v752, 1
        %v832 = vsel %vm831, %v828, %v830
        %v833 = vsel %vm831, %v830, %v828
        %v835 = vlaneseq
        %v836 = vshrl.u32 %v835, 7
        %v837 = vsub.s32 0, %v836
        %v838 = vrot.slane %v742, %v837
        %v839 = vlaneseq
        %v840 = vshrl.u32 %v839, 7
        %v841 = vsub.s32 1, %v840
        %v842 = vrot.slane %v742, %v841
        %v845 = vmul.f32 %v833, %v838
        %v846 = vmul.f32 %v832, %v842
        %v847 = vadd.f32 %v819, %v845
        %v848 = vadd.f32 %v820, %v846
        %v851 = vrot.slane %v723, 4
        %v852 = vrot.slane %v725, 4
        %855 = vrot.lane.b32.xlu0 %v851, 127
        %v856 = vpop.permute.xlu0 %855
        %857 = vrot.lane.b32.xlu0 %v852, 127
        %v858 = vpop.permute.xlu0 %857
        %vm859 = vcmp.lt.s32.totalorder %v752, 127
        %v860 = vsel %vm859, %v856, %v858
        %v861 = vsel %vm859, %v858, %v856
        %v863 = vlaneseq
        %v864 = vshrl.u32 %v863, 7
        %v865 = vsub.s32 0, %v864
        %v866 = vrot.slane %v743, %v865
        %v867 = vlaneseq
        %v868 = vshrl.u32 %v867, 7
        %v869 = vsub.s32 1, %v868
        %v870 = vrot.slane %v743, %v869
        %v873 = vmul.f32 %v860, %v866
        %v874 = vmul.f32 %v861, %v870
        %v875 = vadd.f32 %v847, %v873
        %v876 = vadd.f32 %v848, %v874
        %877 = vrot.lane.b32.xlu0 %v729, 113
        %v878 = vpop.permute.xlu0 %877
        %879 = vrot.lane.b32.xlu0 %v731, 113
        %v880 = vpop.permute.xlu0 %879
        %vm881 = vcmp.lt.s32.totalorder %v752, 113
        %v882 = vsel %vm881, %v878, %v880
        %v883 = vsel %vm881, %v880, %v878
        %v885 = vlaneseq
        %v886 = vshrl.u32 %v885, 7
        %v887 = vsub.s32 0, %v886
        %v888 = vrot.slane %v744, %v887
        %v889 = vlaneseq
        %v890 = vshrl.u32 %v889, 7
        %v891 = vsub.s32 1, %v890
        %v892 = vrot.slane %v744, %v891
        %v895 = vmul.f32 %v882, %v888
        %v896 = vmul.f32 %v883, %v892
        %v897 = vadd.f32 %v875, %v895
        %v898 = vadd.f32 %v876, %v896
        %v901 = vrot.slane %v729, 4
        %v902 = vrot.slane %v731, 4
        %905 = vrot.lane.b32.xlu0 %v901, 112
        %v906 = vpop.permute.xlu0 %905
        %907 = vrot.lane.b32.xlu0 %v902, 112
        %v908 = vpop.permute.xlu0 %907
        %vm909 = vcmp.lt.s32.totalorder %v752, 112
        %v910 = vsel %vm909, %v906, %v908
        %v911 = vsel %vm909, %v908, %v906
        %v913 = vlaneseq
        %v914 = vshrl.u32 %v913, 7
        %v915 = vsub.s32 0, %v914
        %v916 = vrot.slane %v745, %v915
        %v917 = vlaneseq
        %v918 = vshrl.u32 %v917, 7
        %v919 = vsub.s32 1, %v918
        %v920 = vrot.slane %v745, %v919
        %v923 = vmul.f32 %v910, %v916
        %v924 = vmul.f32 %v911, %v920
        %v925 = vadd.f32 %v897, %v923
        %v926 = vadd.f32 %v898, %v924
        %927 = vrot.lane.b32.xlu0 %v735, 111
        %v928 = vpop.permute.xlu0 %927
        %929 = vrot.lane.b32.xlu0 %v737, 111
        %v930 = vpop.permute.xlu0 %929
        %vm931 = vcmp.lt.s32.totalorder %v752, 111
        %v932 = vsel %vm931, %v928, %v930
        %v933 = vsel %vm931, %v930, %v928
        %v935 = vlaneseq
        %v936 = vshrl.u32 %v935, 7
        %v937 = vsub.s32 0, %v936
        %v938 = vrot.slane %v746, %v937
        %v939 = vlaneseq
        %v940 = vshrl.u32 %v939, 7
        %v941 = vsub.s32 1, %v940
        %v942 = vrot.slane %v746, %v941
        %v945 = vmul.f32 %v932, %v938
        %v946 = vmul.f32 %v933, %v942
        %v947 = vadd.f32 %v925, %v945
        %v948 = vadd.f32 %v926, %v946
        %v949 = vld [vmem:[%s3] sm:$0xf]
        %951 = vset.pattern.permute.xlu0 0
        %952 = vperm.xlu0 %951, %v949
        %v953 = vpop.permute.xlu0 %952
        %v955 = vadd.f32 %v947, %v953
        %v956 = vadd.f32 %v948, %v953
        %957 = vmatprep.subr.mxu0 0.0
        %958 = vmatpush1.msra.mxu0 %v455
        %959 = vmatprep.subr.mxu0 0.0
        %960 = vmatpush1.msra.mxu0 %v454
        %961 = vmatprep.subr.mxu0 0.0
        %962 = vmatpush1.msra.mxu0 %v453
        %963 = vmatprep.subr.mxu0 0.0
        %964 = vmatpush1.msra.mxu0 %v452
        %965 = vmatprep.subr.mxu0 0.0
        %966 = vmatpush1.msra.mxu0 %v451
        %967 = vmatprep.subr.mxu0 0.0
        %968 = vmatpush1.msra.mxu0 %v450
        %969 = vmatprep.subr.mxu0 0.0
        %970 = vmatpush1.msra.mxu0 %v449
        %971 = vmatprep.subr.mxu0 0.0
        %972 = vmatpush1.msra.mxu0 %v448
        %973 = vmatprep.subr.mxu0 0.0
        %974 = vmatpush1.msra.mxu0 %v447
        %975 = vmatprep.subr.mxu0 0.0
        %976 = vmatpush1.msra.mxu0 %v446
        %977 = vmatprep.subr.mxu0 0.0
        %978 = vmatpush1.msra.mxu0 %v445
        %979 = vmatprep.subr.mxu0 0.0
        %980 = vmatpush1.msra.mxu0 %v444
        %981 = vmatprep.subr.mxu0 0.0
        %982 = vmatpush1.msra.mxu0 %v443
        %983 = vmatprep.subr.mxu0 0.0
        %984 = vmatpush1.msra.mxu0 %v442
        %985 = vmatprep.subr.mxu0 0.0
        %986 = vmatpush1.msra.mxu0 %v441
        %987 = vmatprep.subr.mxu0 0.0
        %988 = vmatpush1.msra.mxu0 %v440
        %989 = vmatprep.subr.mxu0 0.0
        %990 = vmatpush2.msra.mxu0 %v471
        %991 = vmatprep.subr.mxu0 0.0
        %992 = vmatpush2.msra.mxu0 %v470
        %993 = vmatprep.subr.mxu0 0.0
        %994 = vmatpush2.msra.mxu0 %v469
        %995 = vmatprep.subr.mxu0 0.0
        %996 = vmatpush2.msra.mxu0 %v468
        %997 = vmatprep.subr.mxu0 0.0
        %998 = vmatpush2.msra.mxu0 %v467
        %999 = vmatprep.subr.mxu0 0.0
        %1000 = vmatpush2.msra.mxu0 %v466
        %1001 = vmatprep.subr.mxu0 0.0
        %1002 = vmatpush2.msra.mxu0 %v465
        %1003 = vmatprep.subr.mxu0 0.0
        %1004 = vmatpush2.msra.mxu0 %v464
        %1005 = vmatprep.subr.mxu0 0.0
        %1006 = vmatpush2.msra.mxu0 %v463
        %1007 = vmatprep.subr.mxu0 0.0
        %1008 = vmatpush2.msra.mxu0 %v462
        %1009 = vmatprep.subr.mxu0 0.0
        %1010 = vmatpush2.msra.mxu0 %v461
        %1011 = vmatprep.subr.mxu0 0.0
        %1012 = vmatpush2.msra.mxu0 %v460
        %1013 = vmatprep.subr.mxu0 0.0
        %1014 = vmatpush2.msra.mxu0 %v459
        %1015 = vmatprep.subr.mxu0 0.0
        %1016 = vmatpush2.msra.mxu0 %v458
        %1017 = vmatprep.subr.mxu0 0.0
        %1018 = vmatpush2.msra.mxu0 %v457
        %1019 = vmatprep.subr.mxu0 0.0
        %1020 = vmatpush2.msra.mxu0 %v456
        %1021 = vmatprep.mubr.f32.mxu0 %v956
        %1022 = vmatmul.mubr.f32.gmra.mxu0 %v955
        %v1023 = vpop.f32.mrf.mxu0
        %v1024 = vadd.f32 0.0, %v1023
        %v1025 = vpop.f32.mrf.mxu0
        %1026 = vdwg.mxu0
        %v1027 = vld [vmem:[%s8] sm:$0xf]
        %v1028 = vld [vmem:[%s9] sm:$0xf]
        %vm1029 = vcmask 519168
        %v1030 = vsel %vm1029, %v1024, 0.0
        %1031 = vadd.xlane.f32.xlu0 %v1030
        %v1032 = vpop.xlane.xlu0 %1031
        %v1033 = vrcp.pop 64.0
        %v1034 = vmul.f32 %v1032, %v1033
        %v1035 = vsub.f32 %v1024, %v1034
        %v1036 = vmul.f32 %v1035, %v1035
        %v1037 = vsel %vm1029, %v1036, 0.0
        %1038 = vadd.xlane.f32.xlu0 %v1037
        %v1039 = vpop.xlane.xlu0 %1038
        %v1040 = vmul.f32 %v1039, %v1033
        %v1041 = vadd.f32 %v1040, 1e-05
        %v1042 = vrsqrt.pop %v1041
        %v1043 = vmul.f32 %v1035, %v1042
        %1045 = vset.pattern.permute.xlu0 0
        %1046 = vperm.xlu0 %1045, %v1027
        %v1047 = vpop.permute.xlu0 %1046
        %v1049 = vmul.f32 %v1043, %v1047
        %1051 = vset.pattern.permute.xlu0 0
        %1052 = vperm.xlu0 %1051, %v1028
        %v1053 = vpop.permute.xlu0 %1052
        %v1055 = vadd.f32 %v1049, %v1053
        %vm1056 = vcmp.ge.f32.partialorder %v1055, 0.0
        %v1057 = vmul.f32 %v1055, 0.2
        %v1058 = vsel %vm1056, %v1055, %v1057
        %v1059 = vld [vmem:[%s4] sm:$0xff]
        %v1060 = vld [vmem:[%s4 + $0x8] sm:$0xff]
        %v1061 = vld [vmem:[%s4 + $0x10] sm:$0xff]
        %v1062 = vld [vmem:[%s4 + $0x18] sm:$0xff]
        %v1063 = vld [vmem:[%s4 + $0x20] sm:$0xff]
        %v1064 = vld [vmem:[%s4 + $0x28] sm:$0xff]
        %v1065 = vld [vmem:[%s4 + $0x30] sm:$0xff]
        %v1066 = vld [vmem:[%s4 + $0x38] sm:$0xff]
        %v1067 = vld [vmem:[%s4 + $0x40] sm:$0xff]
        %v1069 = vsel %vm624, %v1059, 0
        %v1072 = vsel %vm624, %v1060, 0
        %v1075 = vsel %vm624, %v1061, 0
        %v1078 = vsel %vm624, %v1062, 0
        %v1081 = vsel %vm624, %v1063, 0
        %v1084 = vsel %vm624, %v1064, 0
        %v1087 = vsel %vm624, %v1065, 0
        %v1090 = vsel %vm624, %v1066, 0
        %v1093 = vsel %vm624, %v1067, 0
        %v1096 = vsel %vm548, %v1058, 0
        %1098 = vmatprep.subr.mxu0 0.0
        %1099 = vmatpush1.msra.mxu0 0.0
        %1100 = vmatprep.subr.mxu0 0.0
        %1101 = vmatpush1.msra.mxu0 0.0
        %1102 = vmatprep.subr.mxu0 0.0
        %1103 = vmatpush1.msra.mxu0 0.0
        %1104 = vmatprep.subr.mxu0 0.0
        %1105 = vmatpush1.msra.mxu0 0.0
        %1106 = vmatprep.subr.mxu0 0.0
        %1107 = vmatpush1.msra.mxu0 0.0
        %1108 = vmatprep.subr.mxu0 0.0
        %1109 = vmatpush1.msra.mxu0 0.0
        %1110 = vmatprep.subr.mxu0 0.0
        %1111 = vmatpush1.msra.mxu0 0.0
        %1112 = vmatprep.subr.mxu0 0.0
        %1113 = vmatpush1.msra.mxu0 0.0
        %1114 = vmatprep.subr.mxu0 0.0
        %1115 = vmatpush1.msra.mxu0 0.0
        %1116 = vmatprep.subr.mxu0 0.0
        %1117 = vmatpush1.msra.mxu0 0.0
        %1118 = vmatprep.subr.mxu0 0.0
        %1119 = vmatpush1.msra.mxu0 0.0
        %1120 = vmatprep.subr.mxu0 0.0
        %1121 = vmatpush1.msra.mxu0 0.0
        %1122 = vmatprep.subr.mxu0 0.0
        %1123 = vmatpush1.msra.mxu0 0.0
        %1124 = vmatprep.subr.mxu0 0.0
        %1125 = vmatpush1.msra.mxu0 0.0
        %1126 = vmatprep.subr.mxu0 0.0
        %1127 = vmatpush1.msra.mxu0 0.0
        %1128 = vmatprep.subr.mxu0 0.0
        %1129 = vmatpush1.msra.mxu0 %v1096
        %1130 = vmatprep.subr.mxu0 0.0
        %1131 = vmatpush2.msra.mxu0 0.0
        %1132 = vmatprep.subr.mxu0 0.0
        %1133 = vmatpush2.msra.mxu0 0.0
        %1134 = vmatprep.subr.mxu0 0.0
        %1135 = vmatpush2.msra.mxu0 0.0
        %1136 = vmatprep.subr.mxu0 0.0
        %1137 = vmatpush2.msra.mxu0 0.0
        %1138 = vmatprep.subr.mxu0 0.0
        %1139 = vmatpush2.msra.mxu0 0.0
        %1140 = vmatprep.subr.mxu0 0.0
        %1141 = vmatpush2.msra.mxu0 0.0
        %1142 = vmatprep.subr.mxu0 0.0
        %1143 = vmatpush2.msra.mxu0 0.0
        %1144 = vmatprep.subr.mxu0 0.0
        %1145 = vmatpush2.msra.mxu0 0.0
        %1146 = vmatprep.subr.mxu0 0.0
        %1147 = vmatpush2.msra.mxu0 0.0
        %1148 = vmatprep.subr.mxu0 0.0
        %1149 = vmatpush2.msra.mxu0 0.0
        %1150 = vmatprep.subr.mxu0 0.0
        %1151 = vmatpush2.msra.mxu0 0.0
        %1152 = vmatprep.subr.mxu0 0.0
        %1153 = vmatpush2.msra.mxu0 0.0
        %1154 = vmatprep.subr.mxu0 0.0
        %1155 = vmatpush2.msra.mxu0 0.0
        %1156 = vmatprep.subr.mxu0 0.0
        %1157 = vmatpush2.msra.mxu0 0.0
        %1158 = vmatprep.subr.mxu0 0.0
        %1159 = vmatpush2.msra.mxu0 0.0
        %1160 = vmatprep.subr.mxu0 0.0
        %1161 = vmatpush2.msra.mxu0 0.0
        %1162 = vmatprep.mubr.f32.mxu0 0.0
        %1163 = vmatmul.mubr.f32.gmra.mxu0 %v1069
        %v1164 = vpop.f32.mrf.mxu0
        %v1165 = vadd.f32 0.0, %v1164
        %v1166 = vpop.f32.mrf.mxu0
        %1167 = vmatprep.mubr.f32.mxu0 0.0
        %1168 = vmatmul.mubr.f32.gmra.mxu0 %v1072
        %v1169 = vpop.f32.mrf.mxu0
        %v1170 = vadd.f32 0.0, %v1169
        %v1171 = vpop.f32.mrf.mxu0
        %1172 = vmatprep.mubr.f32.mxu0 0.0
        %1173 = vmatmul.mubr.f32.gmra.mxu0 %v1075
        %v1174 = vpop.f32.mrf.mxu0
        %v1175 = vadd.f32 0.0, %v1174
        %v1176 = vpop.f32.mrf.mxu0
        %1177 = vmatprep.mubr.f32.mxu0 0.0
        %1178 = vmatmul.mubr.f32.gmra.mxu0 %v1078
        %v1179 = vpop.f32.mrf.mxu0
        %v1180 = vadd.f32 0.0, %v1179
        %v1181 = vpop.f32.mrf.mxu0
        %1182 = vmatprep.mubr.f32.mxu0 0.0
        %1183 = vmatmul.mubr.f32.gmra.mxu0 %v1081
        %v1184 = vpop.f32.mrf.mxu0
        %v1185 = vadd.f32 0.0, %v1184
        %v1186 = vpop.f32.mrf.mxu0
        %1187 = vmatprep.mubr.f32.mxu0 0.0
        %1188 = vmatmul.mubr.f32.gmra.mxu0 %v1084
        %v1189 = vpop.f32.mrf.mxu0
        %v1190 = vadd.f32 0.0, %v1189
        %v1191 = vpop.f32.mrf.mxu0
        %1192 = vmatprep.mubr.f32.mxu0 0.0
        %1193 = vmatmul.mubr.f32.gmra.mxu0 %v1087
        %v1194 = vpop.f32.mrf.mxu0
        %v1195 = vadd.f32 0.0, %v1194
        %v1196 = vpop.f32.mrf.mxu0
        %1197 = vmatprep.mubr.f32.mxu0 0.0
        %1198 = vmatmul.mubr.f32.gmra.mxu0 %v1090
        %v1199 = vpop.f32.mrf.mxu0
        %v1200 = vadd.f32 0.0, %v1199
        %v1201 = vpop.f32.mrf.mxu0
        %1202 = vmatprep.mubr.f32.mxu0 0.0
        %1203 = vmatmul.mubr.f32.gmra.mxu0 %v1093
        %v1204 = vpop.f32.mrf.mxu0
        %v1205 = vadd.f32 0.0, %v1204
        %v1206 = vpop.f32.mrf.mxu0
        %1207 = vdwg.mxu0
        %v1208 = vld [vmem:[%s11] sm:$0x1]
        %v1209 = vld [vmem:[%s11 + $0x1] sm:$0x1]
        %v1210 = vld [vmem:[%s11 + $0x2] sm:$0x1]
        %v1211 = vld [vmem:[%s11 + $0x3] sm:$0x1]
        %v1212 = vld [vmem:[%s11 + $0x5] sm:$0x1]
        %v1213 = vld [vmem:[%s11 + $0x6] sm:$0x1]
        %v1214 = vld [vmem:[%s11 + $0x7] sm:$0x1]
        %v1215 = vld [vmem:[%s11 + $0x8] sm:$0x1]
        %vm1216 = vcmask 1048064
        %1217 = vrot.lane.b32.xlu0 %v1165, 64
        %v1218 = vpop.permute.xlu0 %1217
        %v1219 = vsel %vm1216, %v1218, %v1165
        %1220 = vrot.lane.b32.xlu0 %v1219, 64
        %v1221 = vpop.permute.xlu0 %1220
        %v1222 = vsel %vm1216, %v1221, %v1165
        %v1224 = vlaneseq
        %v1225 = vshrl.u32 %v1224, 7
        %v1226 = vsub.s32 0, %v1225
        %v1227 = vrot.slane %v1208, %v1226
        %1228 = vrot.lane.b32.xlu0 %v1227, 55
        %v1229 = vpop.permute.xlu0 %1228
        %v1231 = vmul.f32 %v1222, %v1229
        %1233 = vrot.lane.b32.xlu0 %v1231, 73
        %v1234 = vpop.permute.xlu0 %1233
        %v1236 = vadd.f32 %v1185, %v1234
        %1237 = vrot.lane.b32.xlu0 %v1170, 64
        %v1238 = vpop.permute.xlu0 %1237
        %v1239 = vsel %vm1216, %v1238, %v1170
        %1240 = vrot.lane.b32.xlu0 %v1239, 64
        %v1241 = vpop.permute.xlu0 %1240
        %v1242 = vsel %vm1216, %v1241, %v1170
        %v1244 = vlaneseq
        %v1245 = vshrl.u32 %v1244, 7
        %v1246 = vsub.s32 0, %v1245
        %v1247 = vrot.slane %v1209, %v1246
        %1248 = vrot.lane.b32.xlu0 %v1247, 56
        %v1249 = vpop.permute.xlu0 %1248
        %v1251 = vmul.f32 %v1242, %v1249
        %1253 = vrot.lane.b32.xlu0 %v1251, 72
        %v1254 = vpop.permute.xlu0 %1253
        %v1256 = vadd.f32 %v1236, %v1254
        %1257 = vrot.lane.b32.xlu0 %v1175, 64
        %v1258 = vpop.permute.xlu0 %1257
        %v1259 = vsel %vm1216, %v1258, %v1175
        %1260 = vrot.lane.b32.xlu0 %v1259, 64
        %v1261 = vpop.permute.xlu0 %1260
        %v1262 = vsel %vm1216, %v1261, %v1175
        %v1264 = vlaneseq
        %v1265 = vshrl.u32 %v1264, 7
        %v1266 = vsub.s32 0, %v1265
        %v1267 = vrot.slane %v1210, %v1266
        %1268 = vrot.lane.b32.xlu0 %v1267, 57
        %v1269 = vpop.permute.xlu0 %1268
        %v1271 = vmul.f32 %v1262, %v1269
        %1273 = vrot.lane.b32.xlu0 %v1271, 71
        %v1274 = vpop.permute.xlu0 %1273
        %v1276 = vadd.f32 %v1256, %v1274
        %1277 = vrot.lane.b32.xlu0 %v1180, 64
        %v1278 = vpop.permute.xlu0 %1277
        %v1279 = vsel %vm1216, %v1278, %v1180
        %1280 = vrot.lane.b32.xlu0 %v1279, 64
        %v1281 = vpop.permute.xlu0 %1280
        %v1282 = vsel %vm1216, %v1281, %v1180
        %v1284 = vlaneseq
        %v1285 = vshrl.u32 %v1284, 7
        %v1286 = vsub.s32 0, %v1285
        %v1287 = vrot.slane %v1211, %v1286
        %1288 = vrot.lane.b32.xlu0 %v1287, 63
        %v1289 = vpop.permute.xlu0 %1288
        %v1291 = vmul.f32 %v1282, %v1289
        %1293 = vrot.lane.b32.xlu0 %v1291, 65
        %v1294 = vpop.permute.xlu0 %1293
        %v1296 = vadd.f32 %v1276, %v1294
        %1297 = vrot.lane.b32.xlu0 %v1190, 64
        %v1298 = vpop.permute.xlu0 %1297
        %v1299 = vsel %vm1216, %v1298, %v1190
        %1300 = vrot.lane.b32.xlu0 %v1299, 64
        %v1301 = vpop.permute.xlu0 %1300
        %v1302 = vsel %vm1216, %v1301, %v1190
        %v1304 = vlaneseq
        %v1305 = vshrl.u32 %v1304, 7
        %v1306 = vsub.s32 0, %v1305
        %v1307 = vrot.slane %v1212, %v1306
        %1308 = vrot.lane.b32.xlu0 %v1307, 1
        %v1309 = vpop.permute.xlu0 %1308
        %v1311 = vmul.f32 %v1302, %v1309
        %1313 = vrot.lane.b32.xlu0 %v1311, 127
        %v1314 = vpop.permute.xlu0 %1313
        %v1316 = vadd.f32 %v1296, %v1314
        %1317 = vrot.lane.b32.xlu0 %v1195, 64
        %v1318 = vpop.permute.xlu0 %1317
        %v1319 = vsel %vm1216, %v1318, %v1195
        %1320 = vrot.lane.b32.xlu0 %v1319, 64
        %v1321 = vpop.permute.xlu0 %1320
        %v1322 = vsel %vm1216, %v1321, %v1195
        %v1324 = vlaneseq
        %v1325 = vshrl.u32 %v1324, 7
        %v1326 = vsub.s32 0, %v1325
        %v1327 = vrot.slane %v1213, %v1326
        %1328 = vrot.lane.b32.xlu0 %v1327, 7
        %v1329 = vpop.permute.xlu0 %1328
        %v1331 = vmul.f32 %v1322, %v1329
        %1333 = vrot.lane.b32.xlu0 %v1331, 121
        %v1334 = vpop.permute.xlu0 %1333
        %v1336 = vadd.f32 %v1316, %v1334
        %1337 = vrot.lane.b32.xlu0 %v1200, 64
        %v1338 = vpop.permute.xlu0 %1337
        %v1339 = vsel %vm1216, %v1338, %v1200
        %1340 = vrot.lane.b32.xlu0 %v1339, 64
        %v1341 = vpop.permute.xlu0 %1340
        %v1342 = vsel %vm1216, %v1341, %v1200
        %v1344 = vlaneseq
        %v1345 = vshrl.u32 %v1344, 7
        %v1346 = vsub.s32 0, %v1345
        %v1347 = vrot.slane %v1214, %v1346
        %1348 = vrot.lane.b32.xlu0 %v1347, 8
        %v1349 = vpop.permute.xlu0 %1348
        %v1351 = vmul.f32 %v1342, %v1349
        %1353 = vrot.lane.b32.xlu0 %v1351, 120
        %v1354 = vpop.permute.xlu0 %1353
        %v1356 = vadd.f32 %v1336, %v1354
        %1357 = vrot.lane.b32.xlu0 %v1205, 64
        %v1358 = vpop.permute.xlu0 %1357
        %v1359 = vsel %vm1216, %v1358, %v1205
        %1360 = vrot.lane.b32.xlu0 %v1359, 64
        %v1361 = vpop.permute.xlu0 %1360
        %v1362 = vsel %vm1216, %v1361, %v1205
        %v1364 = vlaneseq
        %v1365 = vshrl.u32 %v1364, 7
        %v1366 = vsub.s32 0, %v1365
        %v1367 = vrot.slane %v1215, %v1366
        %1368 = vrot.lane.b32.xlu0 %v1367, 9
        %v1369 = vpop.permute.xlu0 %1368
        %v1371 = vmul.f32 %v1362, %v1369
        %1373 = vrot.lane.b32.xlu0 %v1371, 119
        %v1374 = vpop.permute.xlu0 %1373
        %v1376 = vadd.f32 %v1356, %v1374
        %v1377 = vld [vmem:[%s5] sm:$0xff]
        %1379 = vset.pattern.permute.xlu0 0
        %1380 = vperm.xlu0 %1379, %v1377
        %v1381 = vpop.permute.xlu0 %1380
        %v1383 = vadd.f32 %v1376, %v1381
        %v1385 = vsel %vm624, %v545, 0
        %v1388 = vsel %vm548, %v542, 0
        %1390 = vmatprep.subr.mxu0 0.0
        %1391 = vmatpush1.msra.mxu0 0.0
        %1392 = vmatprep.subr.mxu0 0.0
        %1393 = vmatpush1.msra.mxu0 0.0
        %1394 = vmatprep.subr.mxu0 0.0
        %1395 = vmatpush1.msra.mxu0 0.0
        %1396 = vmatprep.subr.mxu0 0.0
        %1397 = vmatpush1.msra.mxu0 0.0
        %1398 = vmatprep.subr.mxu0 0.0
        %1399 = vmatpush1.msra.mxu0 0.0
        %1400 = vmatprep.subr.mxu0 0.0
        %1401 = vmatpush1.msra.mxu0 0.0
        %1402 = vmatprep.subr.mxu0 0.0
        %1403 = vmatpush1.msra.mxu0 0.0
        %1404 = vmatprep.subr.mxu0 0.0
        %1405 = vmatpush1.msra.mxu0 0.0
        %1406 = vmatprep.subr.mxu0 0.0
        %1407 = vmatpush1.msra.mxu0 0.0
        %1408 = vmatprep.subr.mxu0 0.0
        %1409 = vmatpush1.msra.mxu0 0.0
        %1410 = vmatprep.subr.mxu0 0.0
        %1411 = vmatpush1.msra.mxu0 0.0
        %1412 = vmatprep.subr.mxu0 0.0
        %1413 = vmatpush1.msra.mxu0 0.0
        %1414 = vmatprep.subr.mxu0 0.0
        %1415 = vmatpush1.msra.mxu0 0.0
        %1416 = vmatprep.subr.mxu0 0.0
        %1417 = vmatpush1.msra.mxu0 0.0
        %1418 = vmatprep.subr.mxu0 0.0
        %1419 = vmatpush1.msra.mxu0 0.0
        %1420 = vmatprep.subr.mxu0 0.0
        %1421 = vmatpush1.msra.mxu0 %v1388
        %1422 = vmatprep.subr.mxu0 0.0
        %1423 = vmatpush2.msra.mxu0 0.0
        %1424 = vmatprep.subr.mxu0 0.0
        %1425 = vmatpush2.msra.mxu0 0.0
        %1426 = vmatprep.subr.mxu0 0.0
        %1427 = vmatpush2.msra.mxu0 0.0
        %1428 = vmatprep.subr.mxu0 0.0
        %1429 = vmatpush2.msra.mxu0 0.0
        %1430 = vmatprep.subr.mxu0 0.0
        %1431 = vmatpush2.msra.mxu0 0.0
        %1432 = vmatprep.subr.mxu0 0.0
        %1433 = vmatpush2.msra.mxu0 0.0
        %1434 = vmatprep.subr.mxu0 0.0
        %1435 = vmatpush2.msra.mxu0 0.0
        %1436 = vmatprep.subr.mxu0 0.0
        %1437 = vmatpush2.msra.mxu0 0.0
        %1438 = vmatprep.subr.mxu0 0.0
        %1439 = vmatpush2.msra.mxu0 0.0
        %1440 = vmatprep.subr.mxu0 0.0
        %1441 = vmatpush2.msra.mxu0 0.0
        %1442 = vmatprep.subr.mxu0 0.0
        %1443 = vmatpush2.msra.mxu0 0.0
        %1444 = vmatprep.subr.mxu0 0.0
        %1445 = vmatpush2.msra.mxu0 0.0
        %1446 = vmatprep.subr.mxu0 0.0
        %1447 = vmatpush2.msra.mxu0 0.0
        %1448 = vmatprep.subr.mxu0 0.0
        %1449 = vmatpush2.msra.mxu0 0.0
        %1450 = vmatprep.subr.mxu0 0.0
        %1451 = vmatpush2.msra.mxu0 0.0
        %1452 = vmatprep.subr.mxu0 0.0
        %1453 = vmatpush2.msra.mxu0 0.0
        %1454 = vmatprep.mubr.f32.mxu0 0.0
        %1455 = vmatmul.mubr.f32.gmra.mxu0 %v1385
        %v1456 = vpop.f32.mrf.mxu0
        %v1457 = vadd.f32 %v1383, %v1456
        %v1458 = vpop.f32.mrf.mxu0
        %1459 = vdwg.mxu0
        %v1460 = vmul.f32 %v1457, 0.70710677
        %vm1461 = vcmask 523264
        %1462 = vst.msk [vmem:[%s433] sm:$0xff] %vm1461, %v1460
        %s1463 = sand.u32 %s313, 1
        %s1464 = scalar_lea.sflag [#allocation3], %s1463
        %s1465 = sand.u32 %s313, 1
        %s1466 = smul.addr %s1465, 8
        %s1467 = scalar_lea.vmem [#allocation2], %s1466
        // Predicated region
        $region73: #{tpu_custom_call.1} parent=71 // pred_check
          %p1468 = pneg %p323
        $region74: #{tpu_custom_call.1} parent=71 // pred_check_branch
          %1470 = sbr.rel (%p1468) target = $region76
        $region75: #{tpu_custom_call.1} parent=71 // pred_region
          %s1472 = ssub.s32 128, 128
          %1473 = vsyncadd %s1464, %s1472
          %s1474 = smul.addr %s27, 128
          %s1475 = scalar_lea.hbm %s13, %s1474
          %s1477 = sshll.u32 %s1467, 4
          %s1478 = int_to_ptr.vmem [resolvable:$true] %s1477
          %1480 = dma.vmem_to_hbm [thread:$0]  %s1478, 128, %s1475, %s1464
        $region76: #{tpu_custom_call.1} parent=71 // pred_fallthru
          _
      $region72: #{tpu_custom_call.1} parent=5 // pred_fallthru
        _
      %p1481 = scmp.le.s32.totalorder 2, %s22
      // Predicated region
      $region77: #{tpu_custom_call.1} parent=5 // pred_check
        %p1482 = pneg %p1481
      $region78: #{tpu_custom_call.1} parent=5 // pred_check_branch
        %1484 = sbr.rel (%p1482) target = $region80
      $region79: #{tpu_custom_call.1} parent=5 // pred_region
        %s1485 = ssub.s32 %s22, 2
        // Predicated region
        $region81: #{tpu_custom_call.1} parent=79 // pred_check
          %p1486 = pneg %p329
        $region82: #{tpu_custom_call.1} parent=79 // pred_check_branch
          %1488 = sbr.rel (%p1486) target = $region84
        $region83: #{tpu_custom_call.1} parent=79 // pred_region
          %s1489 = sand.u32 %s314, 1
          %s1490 = scalar_lea.sflag [#allocation3], %s1489
          %s1491 = sand.u32 %s314, 1
          %s1492 = smul.addr %s1491, 8
          %s1493 = scalar_lea.vmem [#allocation2], %s1492
          %1494 = dma.done %s1490, 128
        $region84: #{tpu_custom_call.1} parent=79 // pred_fallthru
          _
      $region80: #{tpu_custom_call.1} parent=5 // pred_fallthru
        _
    $region6: #{tpu_custom_call.1} parent=1 // loop_footer
      %s26 = sadd.s32 1, %s22
    $region7: #{tpu_custom_call.1} parent=1 // loop_footer_branch
      %21 = sbr.rel target = $region3
    $region8: #{tpu_custom_call.1} parent=1 // loop_exit
      _
    %1495 = vsyncpa [#allocation3], 1
    %s1496 = scalar_lea.sflag [#allocation3], 1
    %1497 = vsyncpa %s1496, 1

</llo_original>
